<compile_context>
chip_gen: v5e
topology: v5e:2x2
jax: 0.10.0
libtpu: 0.0.40
codegen_flags: <defaults>
</compile_context>

<pallas_src>
import functools

import jax
import jax.numpy as jnp
from jax.experimental import pallas as pl
from jax.experimental.pallas import tpu as pltpu


# ---------------------------------------------------------------------------
# Fused Pallas kernel: num_layers LSTM cell steps + Linear head
# ---------------------------------------------------------------------------
def _fused_decoder_kernel(x_ref, h0_ref, c0_ref, w_ref, b_ref,
                          wlin_ref, blin_ref,
                          out_ref, hn_ref, cn_ref,
                          xh_ref,
                          *, num_layers, hidden_size, in_max):
    """All operands are single VMEM blocks.

    x_ref:    (B, In_max)          layer-0 input, zero-padded to In_max lanes (f32)
    h0_ref:   (L, B, H)            initial hidden states (f32)
    c0_ref:   (L, B, H)            initial cell states (f32)
    w_ref:    (L, In_max+H, 4H)    [W_ih^T ; W_hh^T] per layer (bf16, zero-row padded)
    b_ref:    (L, 1, 4H)           b_ih + b_hh per layer (f32)
    wlin_ref: (H, Out)             linear W^T (bf16)
    blin_ref: (1, Out)             linear bias (f32)
    out_ref:  (B, Out)             linear output (f32)
    hn_ref:   (L, B, H)            final hidden states (f32)
    cn_ref:   (L, B, H)            final cell states (f32)
    xh_ref:   (B, In_max+H)        persistent input||hidden scratch (bf16)
    """
    H = hidden_size
    K = in_max

    # Lanes [0:In_max) hold the layer input, lanes [In_max:In_max+H) hold h_prev.
    xh_ref[:, :K] = x_ref[...].astype(xh_ref.dtype)

    top_h = None
    for l in range(num_layers):                 # static unroll: L is compile-time
        xh_ref[:, K:] = h0_ref[l].astype(xh_ref.dtype)

        # Single fused matmul per layer: [x | h_prev] @ [W_ih^T ; W_hh^T] + b.
        gates = (jnp.dot(xh_ref[...], w_ref[l],
                         preferred_element_type=jnp.float32)
                 + b_ref[l])                    # (B, 4H), f32

        i_g = jax.nn.sigmoid(gates[:, 0 * H:1 * H])
        f_g = jax.nn.sigmoid(gates[:, 1 * H:2 * H])
        g_g = jnp.tanh(gates[:, 2 * H:3 * H])
        o_g = jax.nn.sigmoid(gates[:, 3 * H:4 * H])

        c_new = f_g * c0_ref[l] + i_g * g_g     # f32
        h_new = o_g * jnp.tanh(c_new)           # f32

        hn_ref[l] = h_new
        cn_ref[l] = c_new
        top_h = h_new

        if l + 1 < num_layers:
            # Next layer's input: only the first H lanes matter. When
            # input_size > hidden_size the stale lanes [H:In_max) multiply
            # zero-padded weight rows, so no re-zeroing / concatenate needed.
            xh_ref[:, :H] = h_new.astype(xh_ref.dtype)

    # Linear head on the top layer's hidden state (== lstm_out.squeeze(0)).
    out_ref[...] = (jnp.dot(top_h.astype(wlin_ref.dtype), wlin_ref[...],
                            preferred_element_type=jnp.float32)
                    + blin_ref[...])


# ---------------------------------------------------------------------------
# One-time weight preprocessing (hoisted out of the forward path)
# ---------------------------------------------------------------------------
def prepare_decoder_params(params, input_size, hidden_size, num_layers,
                           weight_dtype=jnp.bfloat16):
    """Transpose, fuse (W_ih|W_hh) and biases, pad, stack and cast — once."""
    in_max = max(input_size, hidden_size)

    w_list = []
    for l in range(num_layers):
        wih = params[f"w_ih_{l}"].T                     # (in_dim, 4H)
        in_dim = wih.shape[0]
        if in_dim < in_max:
            wih = jnp.pad(wih, ((0, in_max - in_dim), (0, 0)))
        whh = params[f"w_hh_{l}"].T                     # (H, 4H)
        w_list.append(jnp.concatenate([wih, whh], axis=0))  # (In_max+H, 4H)

    fused = {
        # bf16 weight slabs: halves the dominating per-call HBM->VMEM DMA and is
        # the MXU-native input dtype on all of v5e/v6e/v7x.
        # (NOTE: int8 weights would not lower on v7x's MXU — stay bf16/fp8 there.)
        "w_all": jnp.stack(w_list).astype(weight_dtype),             # (L, In_max+H, 4H)
        "b_all": jnp.stack([(params[f"b_ih_{l}"]
                             + params[f"b_hh_{l}"]).reshape(1, -1)
                            for l in range(num_layers)]
                           ).astype(jnp.float32),                    # (L, 1, 4H)
        "w_lin_t": params["w_lin"].T.astype(weight_dtype),           # (H, Out)
        "b_lin": params["b_lin"].reshape(1, -1).astype(jnp.float32), # (1, Out)
    }
    return fused


# ---------------------------------------------------------------------------
# Jitted forward (single fused pallas_call)
# ---------------------------------------------------------------------------
@jax.jit
def lstm_decoder_forward(fused, x_input, encoder_hidden_states):
    """Mirrors lstm_decoder.forward.

    x_input:               (B, input_size)
    encoder_hidden_states: (h0, c0), each (num_layers, B, hidden_size)
    returns (output, (h_n, c_n)) with output (B, input_size)
    """
    h0, c0 = encoder_hidden_states
    num_layers, B, hidden_size = h0.shape
    in_size = x_input.shape[1]
    kdim = fused["w_all"].shape[1]                  # In_max + H
    in_max = kdim - hidden_size
    out_dim = fused["w_lin_t"].shape[1]
    gdim = 4 * hidden_size

    x_pad = x_input.astype(jnp.float32)
    if in_size < in_max:
        x_pad = jnp.pad(x_pad, ((0, 0), (0, in_max - in_size)))

    # Advisory cost hint for the XLA scheduler around this small custom call.
    wbytes = (fused["w_all"].size * fused["w_all"].dtype.itemsize
              + fused["w_lin_t"].size * fused["w_lin_t"].dtype.itemsize
              + fused["b_all"].size * 4 + fused["b_lin"].size * 4)
    state_bytes = 4 * (x_pad.size + 4 * num_layers * B * hidden_size
                       + B * out_dim)
    cost = pl.CostEstimate(
        flops=2 * num_layers * B * kdim * gdim + 2 * B * hidden_size * out_dim,
        transcendentals=5 * num_layers * B * hidden_size,
        bytes_accessed=wbytes + state_bytes)

    vmem = pl.BlockSpec(memory_space=pltpu.MemorySpace.VMEM)
    out, h_n, c_n = pl.pallas_call(
        functools.partial(_fused_decoder_kernel,
                          num_layers=num_layers,
                          hidden_size=hidden_size,
                          in_max=in_max),
        out_shape=(jax.ShapeDtypeStruct((B, out_dim), jnp.float32),
                   jax.ShapeDtypeStruct((num_layers, B, hidden_size),
                                        jnp.float32),
                   jax.ShapeDtypeStruct((num_layers, B, hidden_size),
                                        jnp.float32)),
        in_specs=[vmem] * 7,
        out_specs=(vmem, vmem, vmem),
        scratch_shapes=[pltpu.VMEM((B, kdim), jnp.bfloat16)],
        cost_estimate=cost,
    )(x_pad, h0, c0,
      fused["w_all"], fused["b_all"],
      fused["w_lin_t"], fused["b_lin"])

    return out, (h_n, c_n)


# ---------------------------------------------------------------------------
# Pure-JAX f32 reference (for a silent correctness check)
# ---------------------------------------------------------------------------
def _reference_forward(params, x_input, encoder_hidden_states):
    h0, c0 = encoder_hidden_states
    num_layers, _, H = h0.shape
    layer_in = x_input
    h_list, c_list = [], []
    for l in range(num_layers):
        gates = (layer_in @ params[f"w_ih_{l}"].T + params[f"b_ih_{l}"]
                 + h0[l] @ params[f"w_hh_{l}"].T + params[f"b_hh_{l}"])
        i = jax.nn.sigmoid(gates[:, 0 * H:1 * H])
        f = jax.nn.sigmoid(gates[:, 1 * H:2 * H])
        g = jnp.tanh(gates[:, 2 * H:3 * H])
        o = jax.nn.sigmoid(gates[:, 3 * H:4 * H])
        c = f * c0[l] + i * g
        h = o * jnp.tanh(c)
        h_list.append(h)
        c_list.append(c)
        layer_in = h
    out = layer_in @ params["w_lin"].T + params["b_lin"]
    return out, (jnp.stack(h_list), jnp.stack(c_list))


# ---------------------------------------------------------------------------
# Deterministic parameter init (PyTorch-style U(-1/sqrt(H), 1/sqrt(H)))
# ---------------------------------------------------------------------------
def init_params(key, input_size, hidden_size, num_layers):
    k = 1.0 / jnp.sqrt(hidden_size)
    params = {}
    for l in range(num_layers):
        in_dim = input_size if l == 0 else hidden_size
        key, k1, k2, k3, k4 = jax.random.split(key, 5)
        params[f"w_ih_{l}"] = jax.random.uniform(
            k1, (4 * hidden_size, in_dim), jnp.float32, -k, k)
        params[f"w_hh_{l}"] = jax.random.uniform(
            k2, (4 * hidden_size, hidden_size), jnp.float32, -k, k)
        params[f"b_ih_{l}"] = jax.random.uniform(
            k3, (4 * hidden_size,), jnp.float32, -k, k)
        params[f"b_hh_{l}"] = jax.random.uniform(
            k4, (4 * hidden_size,), jnp.float32, -k, k)
    key, k1, k2 = jax.random.split(key, 3)
    params["w_lin"] = jax.random.uniform(
        k1, (input_size, hidden_size), jnp.float32, -k, k)
    params["b_lin"] = jax.random.uniform(
        k2, (input_size,), jnp.float32, -k, k)
    return params


if __name__ == "__main__":
    # Lane/sublane-friendly small shapes: B=8 (full sublane group),
    # H=128 (full vreg lane width => dense gate slices, xh lane slices and stores).
    batch = 8
    input_size = 8
    hidden_size = 128
    num_layers = 3

    root = jax.random.PRNGKey(0)
    pkey, xkey, hkey, ckey = jax.random.split(root, 4)

    params = init_params(pkey, input_size, hidden_size, num_layers)
    fused_params = prepare_decoder_params(params, input_size, hidden_size,
                                          num_layers)

    x_input = jax.random.normal(xkey, (batch, input_size), jnp.float32)
    h0 = jax.random.normal(hkey, (num_layers, batch, hidden_size), jnp.float32)
    c0 = jax.random.normal(ckey, (num_layers, batch, hidden_size), jnp.float32)

    output, (h_n, c_n) = lstm_decoder_forward(fused_params, x_input, (h0, c0))
    jax.block_until_ready((output, h_n, c_n))

    # Silent correctness check against a pure-JAX f32 reference.
    # Tolerance relaxed vs the all-f32 version because weights are bf16 in the
    # kernel (state/gate math itself stays f32).
    ref_out, (ref_h, ref_c) = _reference_forward(params, x_input, (h0, c0))
    assert jnp.allclose(output, ref_out, atol=5e-2, rtol=5e-2)
    assert jnp.allclose(h_n, ref_h, atol=5e-2, rtol=5e-2)
    assert jnp.allclose(c_n, ref_c, atol=5e-2, rtol=5e-2)

    # TODO(synk): PyTorch nn.LSTM with dropout>0 in training mode would apply
    # dropout between layers; this kernel matches eval mode / dropout=0.

    print("KERNEL_OK")
</pallas_src>

<mosaic_0001>
module attributes {stable_mosaic.version = 11 : i64} {
  func.func @_fused_decoder_kernel(%arg0: memref<8x128xf32, #tpu.memory_space<vmem>>, %arg1: memref<3x8x128xf32, #tpu.memory_space<vmem>>, %arg2: memref<3x8x128xf32, #tpu.memory_space<vmem>>, %arg3: memref<3x256x512xbf16, #tpu.memory_space<vmem>>, %arg4: memref<3x1x512xf32, #tpu.memory_space<vmem>>, %arg5: memref<128x8xbf16, #tpu.memory_space<vmem>>, %arg6: memref<1x8xf32, #tpu.memory_space<vmem>>, %arg7: memref<8x8xf32, #tpu.memory_space<vmem>>, %arg8: memref<3x8x128xf32, #tpu.memory_space<vmem>>, %arg9: memref<3x8x128xf32, #tpu.memory_space<vmem>>, %arg10: memref<8x256xbf16, #tpu.memory_space<vmem>>) attributes {dimension_semantics = [], scalar_prefetch = 0 : i64, scratch_operands = 1 : i64, tpu.core_type = #tpu.core_type<tc>} {
    %c0 = arith.constant 0 : index
    %c0_0 = arith.constant 0 : index
    %0 = vector.load %arg0[%c0, %c0_0] : memref<8x128xf32, #tpu.memory_space<vmem>>, vector<8x128xf32>
    %1 = arith.truncf %0 : vector<8x128xf32> to vector<8x128xbf16>
    %c0_1 = arith.constant 0 : index
    %c0_2 = arith.constant 0 : index
    %2 = vector.load %arg10[%c0_1, %c0_2] : memref<8x256xbf16, #tpu.memory_space<vmem>>, vector<8x128xbf16>
    tpu.vector_store %arg10[%c0_1, %c0_2], %1 {strides = array<i32>} : memref<8x256xbf16, #tpu.memory_space<vmem>>, vector<8x128xbf16>,
    %c0_3 = arith.constant 0 : index
    %c0_4 = arith.constant 0 : index
    %c0_5 = arith.constant 0 : index
    %3 = vector.load %arg1[%c0_3, %c0_4, %c0_5] : memref<3x8x128xf32, #tpu.memory_space<vmem>>, vector<1x8x128xf32>
    %4 = vector.shape_cast %3 : vector<1x8x128xf32> to vector<8x128xf32>
    %5 = arith.truncf %4 : vector<8x128xf32> to vector<8x128xbf16>
    %c0_6 = arith.constant 0 : index
    %c128 = arith.constant 128 : index
    %6 = vector.load %arg10[%c0_6, %c128] : memref<8x256xbf16, #tpu.memory_space<vmem>>, vector<8x128xbf16>
    tpu.vector_store %arg10[%c0_6, %c128], %5 {strides = array<i32>} : memref<8x256xbf16, #tpu.memory_space<vmem>>, vector<8x128xbf16>,
    %c0_7 = arith.constant 0 : index
    %c0_8 = arith.constant 0 : index
    %7 = vector.load %arg10[%c0_7, %c0_8] : memref<8x256xbf16, #tpu.memory_space<vmem>>, vector<8x256xbf16>
    %c0_9 = arith.constant 0 : index
    %c0_10 = arith.constant 0 : index
    %c0_11 = arith.constant 0 : index
    %8 = vector.load %arg3[%c0_9, %c0_10, %c0_11] : memref<3x256x512xbf16, #tpu.memory_space<vmem>>, vector<1x256x512xbf16>
    %9 = vector.shape_cast %8 : vector<1x256x512xbf16> to vector<256x512xbf16>
    %cst = arith.constant dense<0.000000e+00> : vector<8x512xf32>
    %10 = tpu.matmul %7, %9, %cst {dimension_numbers = #tpu.dot_dimension_numbers<[1], [0], [0], [1], [0, 0, 1, 1], [], []>} : vector<8x256xbf16>, vector<256x512xbf16>, vector<8x512xf32> -> vector<8x512xf32>
    %c0_12 = arith.constant 0 : index
    %c0_13 = arith.constant 0 : index
    %c0_14 = arith.constant 0 : index
    %11 = vector.load %arg4[%c0_12, %c0_13, %c0_14] : memref<3x1x512xf32, #tpu.memory_space<vmem>>, vector<1x1x512xf32>
    %12 = vector.shape_cast %11 : vector<1x1x512xf32> to vector<1x512xf32>
    %13 = vector.broadcast %12 : vector<1x512xf32> to vector<8x512xf32>
    %14 = arith.addf %10, %13 : vector<8x512xf32>
    %15 = vector.extract_strided_slice %14 {offsets = [0, 0], sizes = [8, 128], strides = [1, 1]} : vector<8x512xf32> to vector<8x128xf32>
    %16 = arith.negf %15 : vector<8x128xf32>
    %17 = math.exp %16 : vector<8x128xf32>
    %cst_15 = arith.constant 1.000000e+00 : f32
    %18 = vector.broadcast %cst_15 : f32 to vector<8x128xf32>
    %19 = arith.addf %18, %17 : vector<8x128xf32>
    %20 = arith.divf %18, %19 : vector<8x128xf32>
    %21 = vector.extract_strided_slice %14 {offsets = [0, 128], sizes = [8, 128], strides = [1, 1]} : vector<8x512xf32> to vector<8x128xf32>
    %22 = arith.negf %21 : vector<8x128xf32>
    %23 = math.exp %22 : vector<8x128xf32>
    %cst_16 = arith.constant 1.000000e+00 : f32
    %24 = vector.broadcast %cst_16 : f32 to vector<8x128xf32>
    %25 = arith.addf %24, %23 : vector<8x128xf32>
    %26 = arith.divf %24, %25 : vector<8x128xf32>
    %27 = vector.extract_strided_slice %14 {offsets = [0, 256], sizes = [8, 128], strides = [1, 1]} : vector<8x512xf32> to vector<8x128xf32>
    %28 = math.tanh %27 : vector<8x128xf32>
    %29 = vector.extract_strided_slice %14 {offsets = [0, 384], sizes = [8, 128], strides = [1, 1]} : vector<8x512xf32> to vector<8x128xf32>
    %30 = arith.negf %29 : vector<8x128xf32>
    %31 = math.exp %30 : vector<8x128xf32>
    %cst_17 = arith.constant 1.000000e+00 : f32
    %32 = vector.broadcast %cst_17 : f32 to vector<8x128xf32>
    %33 = arith.addf %32, %31 : vector<8x128xf32>
    %34 = arith.divf %32, %33 : vector<8x128xf32>
    %c0_18 = arith.constant 0 : index
    %c0_19 = arith.constant 0 : index
    %c0_20 = arith.constant 0 : index
    %35 = vector.load %arg2[%c0_18, %c0_19, %c0_20] : memref<3x8x128xf32, #tpu.memory_space<vmem>>, vector<1x8x128xf32>
    %36 = vector.shape_cast %35 : vector<1x8x128xf32> to vector<8x128xf32>
    %37 = arith.mulf %26, %36 : vector<8x128xf32>
    %38 = arith.mulf %20, %28 : vector<8x128xf32>
    %39 = arith.addf %37, %38 : vector<8x128xf32>
    %40 = math.tanh %39 : vector<8x128xf32>
    %41 = arith.mulf %34, %40 : vector<8x128xf32>
    %c0_21 = arith.constant 0 : index
    %c0_22 = arith.constant 0 : index
    %c0_23 = arith.constant 0 : index
    %42 = vector.load %arg8[%c0_21, %c0_22, %c0_23] : memref<3x8x128xf32, #tpu.memory_space<vmem>>, vector<1x8x128xf32>
    %43 = vector.shape_cast %42 : vector<1x8x128xf32> to vector<8x128xf32>
    %44 = vector.shape_cast %41 : vector<8x128xf32> to vector<1x8x128xf32>
    tpu.vector_store %arg8[%c0_21, %c0_22, %c0_23], %44 {strides = array<i32>} : memref<3x8x128xf32, #tpu.memory_space<vmem>>, vector<1x8x128xf32>,
    %c0_24 = arith.constant 0 : index
    %c0_25 = arith.constant 0 : index
    %c0_26 = arith.constant 0 : index
    %45 = vector.load %arg9[%c0_24, %c0_25, %c0_26] : memref<3x8x128xf32, #tpu.memory_space<vmem>>, vector<1x8x128xf32>
    %46 = vector.shape_cast %45 : vector<1x8x128xf32> to vector<8x128xf32>
    %47 = vector.shape_cast %39 : vector<8x128xf32> to vector<1x8x128xf32>
    tpu.vector_store %arg9[%c0_24, %c0_25, %c0_26], %47 {strides = array<i32>} : memref<3x8x128xf32, #tpu.memory_space<vmem>>, vector<1x8x128xf32>,
    %48 = arith.truncf %41 : vector<8x128xf32> to vector<8x128xbf16>
    %c0_27 = arith.constant 0 : index
    %c0_28 = arith.constant 0 : index
    %49 = vector.load %arg10[%c0_27, %c0_28] : memref<8x256xbf16, #tpu.memory_space<vmem>>, vector<8x128xbf16>
    tpu.vector_store %arg10[%c0_27, %c0_28], %48 {strides = array<i32>} : memref<8x256xbf16, #tpu.memory_space<vmem>>, vector<8x128xbf16>,
    %c1 = arith.constant 1 : index
    %c0_29 = arith.constant 0 : index
    %c0_30 = arith.constant 0 : index
    %50 = vector.load %arg1[%c1, %c0_29, %c0_30] : memref<3x8x128xf32, #tpu.memory_space<vmem>>, vector<1x8x128xf32>
    %51 = vector.shape_cast %50 : vector<1x8x128xf32> to vector<8x128xf32>
    %52 = arith.truncf %51 : vector<8x128xf32> to vector<8x128xbf16>
    %c0_31 = arith.constant 0 : index
    %c128_32 = arith.constant 128 : index
    %53 = vector.load %arg10[%c0_31, %c128_32] : memref<8x256xbf16, #tpu.memory_space<vmem>>, vector<8x128xbf16>
    tpu.vector_store %arg10[%c0_31, %c128_32], %52 {strides = array<i32>} : memref<8x256xbf16, #tpu.memory_space<vmem>>, vector<8x128xbf16>,
    %c0_33 = arith.constant 0 : index
    %c0_34 = arith.constant 0 : index
    %54 = vector.load %arg10[%c0_33, %c0_34] : memref<8x256xbf16, #tpu.memory_space<vmem>>, vector<8x256xbf16>
    %c1_35 = arith.constant 1 : index
    %c0_36 = arith.constant 0 : index
    %c0_37 = arith.constant 0 : index
    %55 = vector.load %arg3[%c1_35, %c0_36, %c0_37] : memref<3x256x512xbf16, #tpu.memory_space<vmem>>, vector<1x256x512xbf16>
    %56 = vector.shape_cast %55 : vector<1x256x512xbf16> to vector<256x512xbf16>
    %cst_38 = arith.constant dense<0.000000e+00> : vector<8x512xf32>
    %57 = tpu.matmul %54, %56, %cst_38 {dimension_numbers = #tpu.dot_dimension_numbers<[1], [0], [0], [1], [0, 0, 1, 1], [], []>} : vector<8x256xbf16>, vector<256x512xbf16>, vector<8x512xf32> -> vector<8x512xf32>
    %c1_39 = arith.constant 1 : index
    %c0_40 = arith.constant 0 : index
    %c0_41 = arith.constant 0 : index
    %58 = vector.load %arg4[%c1_39, %c0_40, %c0_41] : memref<3x1x512xf32, #tpu.memory_space<vmem>>, vector<1x1x512xf32>
    %59 = vector.shape_cast %58 : vector<1x1x512xf32> to vector<1x512xf32>
    %60 = vector.broadcast %59 : vector<1x512xf32> to vector<8x512xf32>
    %61 = arith.addf %57, %60 : vector<8x512xf32>
    %62 = vector.extract_strided_slice %61 {offsets = [0, 0], sizes = [8, 128], strides = [1, 1]} : vector<8x512xf32> to vector<8x128xf32>
    %63 = arith.negf %62 : vector<8x128xf32>
    %64 = math.exp %63 : vector<8x128xf32>
    %cst_42 = arith.constant 1.000000e+00 : f32
    %65 = vector.broadcast %cst_42 : f32 to vector<8x128xf32>
    %66 = arith.addf %65, %64 : vector<8x128xf32>
    %67 = arith.divf %65, %66 : vector<8x128xf32>
    %68 = vector.extract_strided_slice %61 {offsets = [0, 128], sizes = [8, 128], strides = [1, 1]} : vector<8x512xf32> to vector<8x128xf32>
    %69 = arith.negf %68 : vector<8x128xf32>
    %70 = math.exp %69 : vector<8x128xf32>
    %cst_43 = arith.constant 1.000000e+00 : f32
    %71 = vector.broadcast %cst_43 : f32 to vector<8x128xf32>
    %72 = arith.addf %71, %70 : vector<8x128xf32>
    %73 = arith.divf %71, %72 : vector<8x128xf32>
    %74 = vector.extract_strided_slice %61 {offsets = [0, 256], sizes = [8, 128], strides = [1, 1]} : vector<8x512xf32> to vector<8x128xf32>
    %75 = math.tanh %74 : vector<8x128xf32>
    %76 = vector.extract_strided_slice %61 {offsets = [0, 384], sizes = [8, 128], strides = [1, 1]} : vector<8x512xf32> to vector<8x128xf32>
    %77 = arith.negf %76 : vector<8x128xf32>
    %78 = math.exp %77 : vector<8x128xf32>
    %cst_44 = arith.constant 1.000000e+00 : f32
    %79 = vector.broadcast %cst_44 : f32 to vector<8x128xf32>
    %80 = arith.addf %79, %78 : vector<8x128xf32>
    %81 = arith.divf %79, %80 : vector<8x128xf32>
    %c1_45 = arith.constant 1 : index
    %c0_46 = arith.constant 0 : index
    %c0_47 = arith.constant 0 : index
    %82 = vector.load %arg2[%c1_45, %c0_46, %c0_47] : memref<3x8x128xf32, #tpu.memory_space<vmem>>, vector<1x8x128xf32>
    %83 = vector.shape_cast %82 : vector<1x8x128xf32> to vector<8x128xf32>
    %84 = arith.mulf %73, %83 : vector<8x128xf32>
    %85 = arith.mulf %67, %75 : vector<8x128xf32>
    %86 = arith.addf %84, %85 : vector<8x128xf32>
    %87 = math.tanh %86 : vector<8x128xf32>
    %88 = arith.mulf %81, %87 : vector<8x128xf32>
    %c1_48 = arith.constant 1 : index
    %c0_49 = arith.constant 0 : index
    %c0_50 = arith.constant 0 : index
    %89 = vector.load %arg8[%c1_48, %c0_49, %c0_50] : memref<3x8x128xf32, #tpu.memory_space<vmem>>, vector<1x8x128xf32>
    %90 = vector.shape_cast %89 : vector<1x8x128xf32> to vector<8x128xf32>
    %91 = vector.shape_cast %88 : vector<8x128xf32> to vector<1x8x128xf32>
    tpu.vector_store %arg8[%c1_48, %c0_49, %c0_50], %91 {strides = array<i32>} : memref<3x8x128xf32, #tpu.memory_space<vmem>>, vector<1x8x128xf32>,
    %c1_51 = arith.constant 1 : index
    %c0_52 = arith.constant 0 : index
    %c0_53 = arith.constant 0 : index
    %92 = vector.load %arg9[%c1_51, %c0_52, %c0_53] : memref<3x8x128xf32, #tpu.memory_space<vmem>>, vector<1x8x128xf32>
    %93 = vector.shape_cast %92 : vector<1x8x128xf32> to vector<8x128xf32>
    %94 = vector.shape_cast %86 : vector<8x128xf32> to vector<1x8x128xf32>
    tpu.vector_store %arg9[%c1_51, %c0_52, %c0_53], %94 {strides = array<i32>} : memref<3x8x128xf32, #tpu.memory_space<vmem>>, vector<1x8x128xf32>,
    %95 = arith.truncf %88 : vector<8x128xf32> to vector<8x128xbf16>
    %c0_54 = arith.constant 0 : index
    %c0_55 = arith.constant 0 : index
    %96 = vector.load %arg10[%c0_54, %c0_55] : memref<8x256xbf16, #tpu.memory_space<vmem>>, vector<8x128xbf16>
    tpu.vector_store %arg10[%c0_54, %c0_55], %95 {strides = array<i32>} : memref<8x256xbf16, #tpu.memory_space<vmem>>, vector<8x128xbf16>,
    %c2 = arith.constant 2 : index
    %c0_56 = arith.constant 0 : index
    %c0_57 = arith.constant 0 : index
    %97 = vector.load %arg1[%c2, %c0_56, %c0_57] : memref<3x8x128xf32, #tpu.memory_space<vmem>>, vector<1x8x128xf32>
    %98 = vector.shape_cast %97 : vector<1x8x128xf32> to vector<8x128xf32>
    %99 = arith.truncf %98 : vector<8x128xf32> to vector<8x128xbf16>
    %c0_58 = arith.constant 0 : index
    %c128_59 = arith.constant 128 : index
    %100 = vector.load %arg10[%c0_58, %c128_59] : memref<8x256xbf16, #tpu.memory_space<vmem>>, vector<8x128xbf16>
    tpu.vector_store %arg10[%c0_58, %c128_59], %99 {strides = array<i32>} : memref<8x256xbf16, #tpu.memory_space<vmem>>, vector<8x128xbf16>,
    %c0_60 = arith.constant 0 : index
    %c0_61 = arith.constant 0 : index
    %101 = vector.load %arg10[%c0_60, %c0_61] : memref<8x256xbf16, #tpu.memory_space<vmem>>, vector<8x256xbf16>
    %c2_62 = arith.constant 2 : index
    %c0_63 = arith.constant 0 : index
    %c0_64 = arith.constant 0 : index
    %102 = vector.load %arg3[%c2_62, %c0_63, %c0_64] : memref<3x256x512xbf16, #tpu.memory_space<vmem>>, vector<1x256x512xbf16>
    %103 = vector.shape_cast %102 : vector<1x256x512xbf16> to vector<256x512xbf16>
    %cst_65 = arith.constant dense<0.000000e+00> : vector<8x512xf32>
    %104 = tpu.matmul %101, %103, %cst_65 {dimension_numbers = #tpu.dot_dimension_numbers<[1], [0], [0], [1], [0, 0, 1, 1], [], []>} : vector<8x256xbf16>, vector<256x512xbf16>, vector<8x512xf32> -> vector<8x512xf32>
    %c2_66 = arith.constant 2 : index
    %c0_67 = arith.constant 0 : index
    %c0_68 = arith.constant 0 : index
    %105 = vector.load %arg4[%c2_66, %c0_67, %c0_68] : memref<3x1x512xf32, #tpu.memory_space<vmem>>, vector<1x1x512xf32>
    %106 = vector.shape_cast %105 : vector<1x1x512xf32> to vector<1x512xf32>
    %107 = vector.broadcast %106 : vector<1x512xf32> to vector<8x512xf32>
    %108 = arith.addf %104, %107 : vector<8x512xf32>
    %109 = vector.extract_strided_slice %108 {offsets = [0, 0], sizes = [8, 128], strides = [1, 1]} : vector<8x512xf32> to vector<8x128xf32>
    %110 = arith.negf %109 : vector<8x128xf32>
    %111 = math.exp %110 : vector<8x128xf32>
    %cst_69 = arith.constant 1.000000e+00 : f32
    %112 = vector.broadcast %cst_69 : f32 to vector<8x128xf32>
    %113 = arith.addf %112, %111 : vector<8x128xf32>
    %114 = arith.divf %112, %113 : vector<8x128xf32>
    %115 = vector.extract_strided_slice %108 {offsets = [0, 128], sizes = [8, 128], strides = [1, 1]} : vector<8x512xf32> to vector<8x128xf32>
    %116 = arith.negf %115 : vector<8x128xf32>
    %117 = math.exp %116 : vector<8x128xf32>
    %cst_70 = arith.constant 1.000000e+00 : f32
    %118 = vector.broadcast %cst_70 : f32 to vector<8x128xf32>
    %119 = arith.addf %118, %117 : vector<8x128xf32>
    %120 = arith.divf %118, %119 : vector<8x128xf32>
    %121 = vector.extract_strided_slice %108 {offsets = [0, 256], sizes = [8, 128], strides = [1, 1]} : vector<8x512xf32> to vector<8x128xf32>
    %122 = math.tanh %121 : vector<8x128xf32>
    %123 = vector.extract_strided_slice %108 {offsets = [0, 384], sizes = [8, 128], strides = [1, 1]} : vector<8x512xf32> to vector<8x128xf32>
    %124 = arith.negf %123 : vector<8x128xf32>
    %125 = math.exp %124 : vector<8x128xf32>
    %cst_71 = arith.constant 1.000000e+00 : f32
    %126 = vector.broadcast %cst_71 : f32 to vector<8x128xf32>
    %127 = arith.addf %126, %125 : vector<8x128xf32>
    %128 = arith.divf %126, %127 : vector<8x128xf32>
    %c2_72 = arith.constant 2 : index
    %c0_73 = arith.constant 0 : index
    %c0_74 = arith.constant 0 : index
    %129 = vector.load %arg2[%c2_72, %c0_73, %c0_74] : memref<3x8x128xf32, #tpu.memory_space<vmem>>, vector<1x8x128xf32>
    %130 = vector.shape_cast %129 : vector<1x8x128xf32> to vector<8x128xf32>
    %131 = arith.mulf %120, %130 : vector<8x128xf32>
    %132 = arith.mulf %114, %122 : vector<8x128xf32>
    %133 = arith.addf %131, %132 : vector<8x128xf32>
    %134 = math.tanh %133 : vector<8x128xf32>
    %135 = arith.mulf %128, %134 : vector<8x128xf32>
    %c2_75 = arith.constant 2 : index
    %c0_76 = arith.constant 0 : index
    %c0_77 = arith.constant 0 : index
    %136 = vector.load %arg8[%c2_75, %c0_76, %c0_77] : memref<3x8x128xf32, #tpu.memory_space<vmem>>, vector<1x8x128xf32>
    %137 = vector.shape_cast %136 : vector<1x8x128xf32> to vector<8x128xf32>
    %138 = vector.shape_cast %135 : vector<8x128xf32> to vector<1x8x128xf32>
    tpu.vector_store %arg8[%c2_75, %c0_76, %c0_77], %138 {strides = array<i32>} : memref<3x8x128xf32, #tpu.memory_space<vmem>>, vector<1x8x128xf32>,
    %c2_78 = arith.constant 2 : index
    %c0_79 = arith.constant 0 : index
    %c0_80 = arith.constant 0 : index
    %139 = vector.load %arg9[%c2_78, %c0_79, %c0_80] : memref<3x8x128xf32, #tpu.memory_space<vmem>>, vector<1x8x128xf32>
    %140 = vector.shape_cast %139 : vector<1x8x128xf32> to vector<8x128xf32>
    %141 = vector.shape_cast %133 : vector<8x128xf32> to vector<1x8x128xf32>
    tpu.vector_store %arg9[%c2_78, %c0_79, %c0_80], %141 {strides = array<i32>} : memref<3x8x128xf32, #tpu.memory_space<vmem>>, vector<1x8x128xf32>,
    %142 = arith.truncf %135 : vector<8x128xf32> to vector<8x128xbf16>
    %c0_81 = arith.constant 0 : index
    %c0_82 = arith.constant 0 : index
    %143 = vector.load %arg5[%c0_81, %c0_82] : memref<128x8xbf16, #tpu.memory_space<vmem>>, vector<128x8xbf16>
    %cst_83 = arith.constant dense<0.000000e+00> : vector<8x8xf32>
    %144 = tpu.matmul %142, %143, %cst_83 {dimension_numbers = #tpu.dot_dimension_numbers<[1], [0], [0], [1], [0, 0, 1, 1], [], []>} : vector<8x128xbf16>, vector<128x8xbf16>, vector<8x8xf32> -> vector<8x8xf32>
    %c0_84 = arith.constant 0 : index
    %c0_85 = arith.constant 0 : index
    %145 = vector.load %arg6[%c0_84, %c0_85] : memref<1x8xf32, #tpu.memory_space<vmem>>, vector<1x8xf32>
    %146 = vector.broadcast %145 : vector<1x8xf32> to vector<8x8xf32>
    %147 = arith.addf %144, %146 : vector<8x8xf32>
    %c0_86 = arith.constant 0 : index
    %c0_87 = arith.constant 0 : index
    %148 = vector.load %arg7[%c0_86, %c0_87] : memref<8x8xf32, #tpu.memory_space<vmem>>, vector<8x8xf32>
    tpu.vector_store %arg7[%c0_86, %c0_87], %147 {strides = array<i32>} : memref<8x8xf32, #tpu.memory_space<vmem>>, vector<8x8xf32>,
    return
  }
}

</mosaic_0001>

<llo_original>
// kernel: lstm_decoder_forward.1
$region0: #{lstm_decoder_forward.1}
  #allocation0 [shape = 'u32[]', space=smem, size = 0x4, offset = 0x4, fixed_abs, tag = 'smem constant byte address 0x4 - core index']
  #allocation1 [shape = 'u32[72,128]{1,0:T(1,128)}', space=vmem, size = 0x9000, scoped, tag = 'internal scratch']
  #allocation2 [shape = 'bf16[8,256]{1,0:T(8,128)(2,1)}', space=vmem, size = 0x1000, scoped, tag = 'scratch operand']
  %s0 = inlined_call_operand.vmem [shape: f32[8,128], index: 0, kind: input, shape index: {}]
  %s1 = inlined_call_operand.vmem [shape: f32[3,8,128], index: 1, kind: input, shape index: {}]
  %s2 = inlined_call_operand.vmem [shape: f32[3,8,128], index: 2, kind: input, shape index: {}]
  %s3 = inlined_call_operand.hbm [shape: bf16[3,256,512], index: 3, kind: input, shape index: {}]
  %s4 = inlined_call_operand.vmem [shape: f32[3,1,512], index: 4, kind: input, shape index: {}]
  %s5 = inlined_call_operand.vmem [shape: bf16[128,8], index: 5, kind: input, shape index: {}]
  %s6 = inlined_call_operand.vmem [shape: f32[1,8], index: 6, kind: input, shape index: {}]
  %s7 = inlined_call_operand.hbm [shape: f32[8,8], index: 7, kind: output, shape index: {0}]
  %s8 = inlined_call_operand.hbm [shape: f32[3,8,128], index: 8, kind: output, shape index: {1}]
  %s9 = inlined_call_operand.hbm [shape: f32[3,8,128], index: 9, kind: output, shape index: {2}]
  %10 = xla_tuple %s7, %s8, %s9
  %s11 = sld [smem:[#allocation0]]
  $region58: #{lstm_decoder_forward.1} parent=0
    _
  %s13 = ssub.s32 1, %s11
  %s14 = scalar_select 0, %s13, %s11
  $region1: #{lstm_decoder_forward.1} parent=0
    #allocation3 [shape = 'u8[786432]{0}', space=vmem, size = 0xc0000, scoped, tag = 'input window, operand 3, single buffered']
    #allocation4 [shape = 's32[1]{0}', space=sflag, size = 0x4, scoped, tag = 'scoped memory for lstm_decoder_forward.1']
    #allocation5 [shape = 's32[1]{0}', space=sflag, size = 0x4, scoped, tag = 'scoped memory for lstm_decoder_forward.1']
    #allocation6 [shape = 'u8[4096]{0}', space=vmem, size = 0x1000, scoped, tag = 'output window, operand 0, single buffered']
    #allocation7 [shape = 'u8[12288]{0}', space=vmem, size = 0x3000, scoped, tag = 'output window, operand 1, single buffered']
    #allocation8 [shape = 's32[1]{0}', space=sflag, size = 0x4, scoped, tag = 'scoped memory for lstm_decoder_forward.1']
    #allocation9 [shape = 'u8[12288]{0}', space=vmem, size = 0x3000, scoped, tag = 'output window, operand 2, single buffered']
    %15 = vsyncpa [#allocation4], 0
    %16 = vsyncpa [#allocation5], 0
    %17 = vsyncpa [#allocation8], 0
    // Predicated region
    $region2: #{lstm_decoder_forward.1} parent=1 // pred_check
      _
    $region3: #{lstm_decoder_forward.1} parent=1 // pred_check_branch
      %19 = sbr.rel (0) target = $region5
    $region4: #{lstm_decoder_forward.1} parent=1 // pred_region
      _
    $region5: #{lstm_decoder_forward.1} parent=1 // pred_fallthru
      _
    // Predicated region
    $region6: #{lstm_decoder_forward.1} parent=1 // pred_check
      _
    $region7: #{lstm_decoder_forward.1} parent=1 // pred_check_branch
      %21 = sbr.rel (0) target = $region9
    $region8: #{lstm_decoder_forward.1} parent=1 // pred_region
      _
    $region9: #{lstm_decoder_forward.1} parent=1 // pred_fallthru
      _
    // Predicated region
    $region10: #{lstm_decoder_forward.1} parent=1 // pred_check
      _
    $region11: #{lstm_decoder_forward.1} parent=1 // pred_check_branch
      %23 = sbr.rel (0) target = $region13
    $region12: #{lstm_decoder_forward.1} parent=1 // pred_region
      _
    $region13: #{lstm_decoder_forward.1} parent=1 // pred_fallthru
      _
    // Predicated region
    $region14: #{lstm_decoder_forward.1} parent=1 // pred_check
      _
    $region15: #{lstm_decoder_forward.1} parent=1 // pred_check_branch
      %25 = sbr.rel (0) target = $region17
    $region16: #{lstm_decoder_forward.1} parent=1 // pred_region
      %27 = vsyncadd [#allocation4], 0
      %s28 = sshll.u32 %s3, 4
      %s29 = int_to_ptr.hbm [resolvable:$true] %s28
      %s30 = sshll.u32 [#allocation3], 4
      %s31 = int_to_ptr.vmem [resolvable:$true] %s30
      %36 = dma.hbm_to_vmem [thread:$0]  %s29, 24576, %s31, [#allocation4], 256, 256, 16
    $region17: #{lstm_decoder_forward.1} parent=1 // pred_fallthru
      _
    // Predicated region
    $region18: #{lstm_decoder_forward.1} parent=1 // pred_check
      _
    $region19: #{lstm_decoder_forward.1} parent=1 // pred_check_branch
      %38 = sbr.rel (0) target = $region21
    $region20: #{lstm_decoder_forward.1} parent=1 // pred_region
      _
    $region21: #{lstm_decoder_forward.1} parent=1 // pred_fallthru
      _
    // Predicated region
    $region22: #{lstm_decoder_forward.1} parent=1 // pred_check
      _
    $region23: #{lstm_decoder_forward.1} parent=1 // pred_check_branch
      %40 = sbr.rel (0) target = $region25
    $region24: #{lstm_decoder_forward.1} parent=1 // pred_region
      _
    $region25: #{lstm_decoder_forward.1} parent=1 // pred_fallthru
      _
    // Predicated region
    $region26: #{lstm_decoder_forward.1} parent=1 // pred_check
      _
    $region27: #{lstm_decoder_forward.1} parent=1 // pred_check_branch
      %42 = sbr.rel (0) target = $region29
    $region28: #{lstm_decoder_forward.1} parent=1 // pred_region
      _
    $region29: #{lstm_decoder_forward.1} parent=1 // pred_fallthru
      _
    // Predicated region
    $region30: #{lstm_decoder_forward.1} parent=1 // pred_check
      _
    $region31: #{lstm_decoder_forward.1} parent=1 // pred_check_branch
      %44 = sbr.rel (0) target = $region33
    $region32: #{lstm_decoder_forward.1} parent=1 // pred_region
      %46 = dma.done [#allocation4], 24576
    $region33: #{lstm_decoder_forward.1} parent=1 // pred_fallthru
      _
    %v47 = vld [vmem:[%s0] sm:$0xff]
    %v48 = vpack.c.bf16 %v47, %v47
    %49 = vst [vmem:[#allocation2] sm:$0xf] %v48
    %v50 = vld [vmem:[%s1] sm:$0xff]
    %v51 = vpack.c.bf16 %v50, %v50
    %52 = vst [vmem:[#allocation2 + $0x4] sm:$0xf] %v51
    %v53 = vld [vmem:[#allocation2] sm:$0xff]
    %v54 = vld [vmem:[#allocation3] sm:$0xff]
    %v55 = vld [vmem:[#allocation3 + $0x8] sm:$0xff]
    %v56 = vld [vmem:[#allocation3 + $0x10] sm:$0xff]
    %v57 = vld [vmem:[#allocation3 + $0x18] sm:$0xff]
    %v58 = vld [vmem:[#allocation3 + $0x20] sm:$0xff]
    %v59 = vld [vmem:[#allocation3 + $0x28] sm:$0xff]
    %v60 = vld [vmem:[#allocation3 + $0x30] sm:$0xff]
    %v61 = vld [vmem:[#allocation3 + $0x38] sm:$0xff]
    %v62 = vld [vmem:[#allocation3 + $0x40] sm:$0xff]
    %v63 = vld [vmem:[#allocation3 + $0x48] sm:$0xff]
    %v64 = vld [vmem:[#allocation3 + $0x50] sm:$0xff]
    %v65 = vld [vmem:[#allocation3 + $0x58] sm:$0xff]
    %v66 = vld [vmem:[#allocation3 + $0x60] sm:$0xff]
    %v67 = vld [vmem:[#allocation3 + $0x68] sm:$0xff]
    %v68 = vld [vmem:[#allocation3 + $0x70] sm:$0xff]
    %v69 = vld [vmem:[#allocation3 + $0x78] sm:$0xff]
    %v70 = vld [vmem:[#allocation3 + $0x80] sm:$0xff]
    %v71 = vld [vmem:[#allocation3 + $0x88] sm:$0xff]
    %v72 = vld [vmem:[#allocation3 + $0x90] sm:$0xff]
    %v73 = vld [vmem:[#allocation3 + $0x98] sm:$0xff]
    %v74 = vld [vmem:[#allocation3 + $0xa0] sm:$0xff]
    %v75 = vld [vmem:[#allocation3 + $0xa8] sm:$0xff]
    %v76 = vld [vmem:[#allocation3 + $0xb0] sm:$0xff]
    %v77 = vld [vmem:[#allocation3 + $0xb8] sm:$0xff]
    %v78 = vld [vmem:[#allocation3 + $0xc0] sm:$0xff]
    %v79 = vld [vmem:[#allocation3 + $0xc8] sm:$0xff]
    %v80 = vld [vmem:[#allocation3 + $0xd0] sm:$0xff]
    %v81 = vld [vmem:[#allocation3 + $0xd8] sm:$0xff]
    %v82 = vld [vmem:[#allocation3 + $0xe0] sm:$0xff]
    %v83 = vld [vmem:[#allocation3 + $0xe8] sm:$0xff]
    %v84 = vld [vmem:[#allocation3 + $0xf0] sm:$0xff]
    %v85 = vld [vmem:[#allocation3 + $0xf8] sm:$0xff]
    %v86 = vld [vmem:[#allocation3 + $0x100] sm:$0xff]
    %v87 = vld [vmem:[#allocation3 + $0x108] sm:$0xff]
    %v88 = vld [vmem:[#allocation3 + $0x110] sm:$0xff]
    %v89 = vld [vmem:[#allocation3 + $0x118] sm:$0xff]
    %v90 = vld [vmem:[#allocation3 + $0x120] sm:$0xff]
    %v91 = vld [vmem:[#allocation3 + $0x128] sm:$0xff]
    %v92 = vld [vmem:[#allocation3 + $0x130] sm:$0xff]
    %v93 = vld [vmem:[#allocation3 + $0x138] sm:$0xff]
    %v94 = vld [vmem:[#allocation3 + $0x140] sm:$0xff]
    %v95 = vld [vmem:[#allocation3 + $0x148] sm:$0xff]
    %v96 = vld [vmem:[#allocation3 + $0x150] sm:$0xff]
    %v97 = vld [vmem:[#allocation3 + $0x158] sm:$0xff]
    %v98 = vld [vmem:[#allocation3 + $0x160] sm:$0xff]
    %v99 = vld [vmem:[#allocation3 + $0x168] sm:$0xff]
    %v100 = vld [vmem:[#allocation3 + $0x170] sm:$0xff]
    %v101 = vld [vmem:[#allocation3 + $0x178] sm:$0xff]
    %v102 = vld [vmem:[#allocation3 + $0x180] sm:$0xff]
    %v103 = vld [vmem:[#allocation3 + $0x188] sm:$0xff]
    %v104 = vld [vmem:[#allocation3 + $0x190] sm:$0xff]
    %v105 = vld [vmem:[#allocation3 + $0x198] sm:$0xff]
    %v106 = vld [vmem:[#allocation3 + $0x1a0] sm:$0xff]
    %v107 = vld [vmem:[#allocation3 + $0x1a8] sm:$0xff]
    %v108 = vld [vmem:[#allocation3 + $0x1b0] sm:$0xff]
    %v109 = vld [vmem:[#allocation3 + $0x1b8] sm:$0xff]
    %v110 = vld [vmem:[#allocation3 + $0x1c0] sm:$0xff]
    %v111 = vld [vmem:[#allocation3 + $0x1c8] sm:$0xff]
    %v112 = vld [vmem:[#allocation3 + $0x1d0] sm:$0xff]
    %v113 = vld [vmem:[#allocation3 + $0x1d8] sm:$0xff]
    %v114 = vld [vmem:[#allocation3 + $0x1e0] sm:$0xff]
    %v115 = vld [vmem:[#allocation3 + $0x1e8] sm:$0xff]
    %v116 = vld [vmem:[#allocation3 + $0x1f0] sm:$0xff]
    %v117 = vld [vmem:[#allocation3 + $0x1f8] sm:$0xff]
    %v118 = vld [vmem:[%s4] sm:$0xf]
    %v120 = vperm.slane %v118, 0
    %v121 = vperm.slane %v118, 1
    %v122 = vperm.slane %v118, 2
    %v123 = vperm.slane %v118, 3
    %v129 = vunpack.c.l.b16 %v53
    %v130 = vunpack.c.h.b16 %v53
    %v131 = vpack.c.b16 %v129, %v129
    %v132 = vpack.c.b16 %v130, %v130
    %v199 = vunpack.c.l.b16 %v54
    %v200 = vunpack.c.h.b16 %v54
    %v201 = vunpack.c.l.b16 %v55
    %v202 = vunpack.c.h.b16 %v55
    %v203 = vunpack.c.l.b16 %v56
    %v204 = vunpack.c.h.b16 %v56
    %v205 = vunpack.c.l.b16 %v57
    %v206 = vunpack.c.h.b16 %v57
    %v207 = vunpack.c.l.b16 %v58
    %v208 = vunpack.c.h.b16 %v58
    %v209 = vunpack.c.l.b16 %v59
    %v210 = vunpack.c.h.b16 %v59
    %v211 = vunpack.c.l.b16 %v60
    %v212 = vunpack.c.h.b16 %v60
    %v213 = vunpack.c.l.b16 %v61
    %v214 = vunpack.c.h.b16 %v61
    %v215 = vunpack.c.l.b16 %v62
    %v216 = vunpack.c.h.b16 %v62
    %v217 = vunpack.c.l.b16 %v63
    %v218 = vunpack.c.h.b16 %v63
    %v219 = vunpack.c.l.b16 %v64
    %v220 = vunpack.c.h.b16 %v64
    %v221 = vunpack.c.l.b16 %v65
    %v222 = vunpack.c.h.b16 %v65
    %v223 = vunpack.c.l.b16 %v66
    %v224 = vunpack.c.h.b16 %v66
    %v225 = vunpack.c.l.b16 %v67
    %v226 = vunpack.c.h.b16 %v67
    %v227 = vunpack.c.l.b16 %v68
    %v228 = vunpack.c.h.b16 %v68
    %v229 = vunpack.c.l.b16 %v69
    %v230 = vunpack.c.h.b16 %v69
    %v231 = vunpack.c.l.b16 %v70
    %v232 = vunpack.c.h.b16 %v70
    %v233 = vunpack.c.l.b16 %v71
    %v234 = vunpack.c.h.b16 %v71
    %v235 = vunpack.c.l.b16 %v72
    %v236 = vunpack.c.h.b16 %v72
    %v237 = vunpack.c.l.b16 %v73
    %v238 = vunpack.c.h.b16 %v73
    %v239 = vunpack.c.l.b16 %v74
    %v240 = vunpack.c.h.b16 %v74
    %v241 = vunpack.c.l.b16 %v75
    %v242 = vunpack.c.h.b16 %v75
    %v243 = vunpack.c.l.b16 %v76
    %v244 = vunpack.c.h.b16 %v76
    %v245 = vunpack.c.l.b16 %v77
    %v246 = vunpack.c.h.b16 %v77
    %v247 = vunpack.c.l.b16 %v78
    %v248 = vunpack.c.h.b16 %v78
    %v249 = vunpack.c.l.b16 %v79
    %v250 = vunpack.c.h.b16 %v79
    %v251 = vunpack.c.l.b16 %v80
    %v252 = vunpack.c.h.b16 %v80
    %v253 = vunpack.c.l.b16 %v81
    %v254 = vunpack.c.h.b16 %v81
    %v255 = vunpack.c.l.b16 %v82
    %v256 = vunpack.c.h.b16 %v82
    %v257 = vunpack.c.l.b16 %v83
    %v258 = vunpack.c.h.b16 %v83
    %v259 = vunpack.c.l.b16 %v84
    %v260 = vunpack.c.h.b16 %v84
    %v261 = vunpack.c.l.b16 %v85
    %v262 = vunpack.c.h.b16 %v85
    %v263 = vunpack.c.l.b16 %v86
    %v264 = vunpack.c.h.b16 %v86
    %v265 = vunpack.c.l.b16 %v87
    %v266 = vunpack.c.h.b16 %v87
    %v267 = vunpack.c.l.b16 %v88
    %v268 = vunpack.c.h.b16 %v88
    %v269 = vunpack.c.l.b16 %v89
    %v270 = vunpack.c.h.b16 %v89
    %v271 = vunpack.c.l.b16 %v90
    %v272 = vunpack.c.h.b16 %v90
    %v273 = vunpack.c.l.b16 %v91
    %v274 = vunpack.c.h.b16 %v91
    %v275 = vunpack.c.l.b16 %v92
    %v276 = vunpack.c.h.b16 %v92
    %v277 = vunpack.c.l.b16 %v93
    %v278 = vunpack.c.h.b16 %v93
    %v279 = vunpack.c.l.b16 %v94
    %v280 = vunpack.c.h.b16 %v94
    %v281 = vunpack.c.l.b16 %v95
    %v282 = vunpack.c.h.b16 %v95
    %v283 = vunpack.c.l.b16 %v96
    %v284 = vunpack.c.h.b16 %v96
    %v285 = vunpack.c.l.b16 %v97
    %v286 = vunpack.c.h.b16 %v97
    %v287 = vunpack.c.l.b16 %v98
    %v288 = vunpack.c.h.b16 %v98
    %v289 = vunpack.c.l.b16 %v99
    %v290 = vunpack.c.h.b16 %v99
    %v291 = vunpack.c.l.b16 %v100
    %v292 = vunpack.c.h.b16 %v100
    %v293 = vunpack.c.l.b16 %v101
    %v294 = vunpack.c.h.b16 %v101
    %v295 = vunpack.c.l.b16 %v102
    %v296 = vunpack.c.h.b16 %v102
    %v297 = vunpack.c.l.b16 %v103
    %v298 = vunpack.c.h.b16 %v103
    %v299 = vunpack.c.l.b16 %v104
    %v300 = vunpack.c.h.b16 %v104
    %v301 = vunpack.c.l.b16 %v105
    %v302 = vunpack.c.h.b16 %v105
    %v303 = vunpack.c.l.b16 %v106
    %v304 = vunpack.c.h.b16 %v106
    %v305 = vunpack.c.l.b16 %v107
    %v306 = vunpack.c.h.b16 %v107
    %v307 = vunpack.c.l.b16 %v108
    %v308 = vunpack.c.h.b16 %v108
    %v309 = vunpack.c.l.b16 %v109
    %v310 = vunpack.c.h.b16 %v109
    %v311 = vunpack.c.l.b16 %v110
    %v312 = vunpack.c.h.b16 %v110
    %v313 = vunpack.c.l.b16 %v111
    %v314 = vunpack.c.h.b16 %v111
    %v315 = vunpack.c.l.b16 %v112
    %v316 = vunpack.c.h.b16 %v112
    %v317 = vunpack.c.l.b16 %v113
    %v318 = vunpack.c.h.b16 %v113
    %v319 = vunpack.c.l.b16 %v114
    %v320 = vunpack.c.h.b16 %v114
    %v321 = vunpack.c.l.b16 %v115
    %v322 = vunpack.c.h.b16 %v115
    %v323 = vunpack.c.l.b16 %v116
    %v324 = vunpack.c.h.b16 %v116
    %v325 = vunpack.c.l.b16 %v117
    %v326 = vunpack.c.h.b16 %v117
    %v327 = vpack.c.b16 %v203, %v199
    %v328 = vpack.c.b16 %v204, %v200
    %v329 = vpack.c.b16 %v205, %v201
    %v330 = vpack.c.b16 %v206, %v202
    %v331 = vpack.c.b16 %v211, %v207
    %v332 = vpack.c.b16 %v212, %v208
    %v333 = vpack.c.b16 %v213, %v209
    %v334 = vpack.c.b16 %v214, %v210
    %v335 = vpack.c.b16 %v219, %v215
    %v336 = vpack.c.b16 %v220, %v216
    %v337 = vpack.c.b16 %v221, %v217
    %v338 = vpack.c.b16 %v222, %v218
    %v339 = vpack.c.b16 %v227, %v223
    %v340 = vpack.c.b16 %v228, %v224
    %v341 = vpack.c.b16 %v229, %v225
    %v342 = vpack.c.b16 %v230, %v226
    %v343 = vpack.c.b16 %v235, %v231
    %v344 = vpack.c.b16 %v236, %v232
    %v345 = vpack.c.b16 %v237, %v233
    %v346 = vpack.c.b16 %v238, %v234
    %v347 = vpack.c.b16 %v243, %v239
    %v348 = vpack.c.b16 %v244, %v240
    %v349 = vpack.c.b16 %v245, %v241
    %v350 = vpack.c.b16 %v246, %v242
    %v351 = vpack.c.b16 %v251, %v247
    %v352 = vpack.c.b16 %v252, %v248
    %v353 = vpack.c.b16 %v253, %v249
    %v354 = vpack.c.b16 %v254, %v250
    %v355 = vpack.c.b16 %v259, %v255
    %v356 = vpack.c.b16 %v260, %v256
    %v357 = vpack.c.b16 %v261, %v257
    %v358 = vpack.c.b16 %v262, %v258
    %v359 = vpack.c.b16 %v267, %v263
    %v360 = vpack.c.b16 %v268, %v264
    %v361 = vpack.c.b16 %v269, %v265
    %v362 = vpack.c.b16 %v270, %v266
    %v363 = vpack.c.b16 %v275, %v271
    %v364 = vpack.c.b16 %v276, %v272
    %v365 = vpack.c.b16 %v277, %v273
    %v366 = vpack.c.b16 %v278, %v274
    %v367 = vpack.c.b16 %v283, %v279
    %v368 = vpack.c.b16 %v284, %v280
    %v369 = vpack.c.b16 %v285, %v281
    %v370 = vpack.c.b16 %v286, %v282
    %v371 = vpack.c.b16 %v291, %v287
    %v372 = vpack.c.b16 %v292, %v288
    %v373 = vpack.c.b16 %v293, %v289
    %v374 = vpack.c.b16 %v294, %v290
    %v375 = vpack.c.b16 %v299, %v295
    %v376 = vpack.c.b16 %v300, %v296
    %v377 = vpack.c.b16 %v301, %v297
    %v378 = vpack.c.b16 %v302, %v298
    %v379 = vpack.c.b16 %v307, %v303
    %v380 = vpack.c.b16 %v308, %v304
    %v381 = vpack.c.b16 %v309, %v305
    %v382 = vpack.c.b16 %v310, %v306
    %v383 = vpack.c.b16 %v315, %v311
    %v384 = vpack.c.b16 %v316, %v312
    %v385 = vpack.c.b16 %v317, %v313
    %v386 = vpack.c.b16 %v318, %v314
    %v387 = vpack.c.b16 %v323, %v319
    %v388 = vpack.c.b16 %v324, %v320
    %v389 = vpack.c.b16 %v325, %v321
    %v390 = vpack.c.b16 %v326, %v322
    %455 = vmatpush.bf16.msra.mxu0 %v355
    %456 = vmatpush.bf16.msra.mxu0 %v351
    %457 = vmatpush.bf16.msra.mxu0 %v347
    %458 = vmatpush.bf16.msra.mxu0 %v343
    %459 = vmatpush.bf16.msra.mxu0 %v339
    %460 = vmatpush.bf16.msra.mxu0 %v335
    %461 = vmatpush.bf16.msra.mxu0 %v331
    %462 = vmatpush.bf16.msra.mxu0 %v327
    %463 = vmatmul.bf16.gmra.mxu0 %v131
    %v464 = vpop.f32.mrf.mxu0
    %v465 = vadd.f32 %v120, %v464
    %v466 = vpop.f32.mrf.mxu0
    %467 = vdwg.mxu0
    %468 = vmatpush.bf16.msra.mxu0 %v387
    %469 = vmatpush.bf16.msra.mxu0 %v383
    %470 = vmatpush.bf16.msra.mxu0 %v379
    %471 = vmatpush.bf16.msra.mxu0 %v375
    %472 = vmatpush.bf16.msra.mxu0 %v371
    %473 = vmatpush.bf16.msra.mxu0 %v367
    %474 = vmatpush.bf16.msra.mxu0 %v363
    %475 = vmatpush.bf16.msra.mxu0 %v359
    %476 = vmatmul.bf16.gmra.mxu0 %v132
    %v477 = vpop.f32.mrf.mxu0
    %v478 = vadd.f32 %v465, %v477
    %v479 = vpop.f32.mrf.mxu0
    %480 = vdwg.mxu0
    %481 = vmatpush.bf16.msra.mxu0 %v356
    %482 = vmatpush.bf16.msra.mxu0 %v352
    %483 = vmatpush.bf16.msra.mxu0 %v348
    %484 = vmatpush.bf16.msra.mxu0 %v344
    %485 = vmatpush.bf16.msra.mxu0 %v340
    %486 = vmatpush.bf16.msra.mxu0 %v336
    %487 = vmatpush.bf16.msra.mxu0 %v332
    %488 = vmatpush.bf16.msra.mxu0 %v328
    %489 = vmatmul.bf16.gmra.mxu0 %v131
    %v490 = vpop.f32.mrf.mxu0
    %v491 = vadd.f32 %v121, %v490
    %v492 = vpop.f32.mrf.mxu0
    %493 = vdwg.mxu0
    %494 = vmatpush.bf16.msra.mxu0 %v388
    %495 = vmatpush.bf16.msra.mxu0 %v384
    %496 = vmatpush.bf16.msra.mxu0 %v380
    %497 = vmatpush.bf16.msra.mxu0 %v376
    %498 = vmatpush.bf16.msra.mxu0 %v372
    %499 = vmatpush.bf16.msra.mxu0 %v368
    %500 = vmatpush.bf16.msra.mxu0 %v364
    %501 = vmatpush.bf16.msra.mxu0 %v360
    %502 = vmatmul.bf16.gmra.mxu0 %v132
    %v503 = vpop.f32.mrf.mxu0
    %v504 = vadd.f32 %v491, %v503
    %v505 = vpop.f32.mrf.mxu0
    %506 = vdwg.mxu0
    %507 = vmatpush.bf16.msra.mxu0 %v357
    %508 = vmatpush.bf16.msra.mxu0 %v353
    %509 = vmatpush.bf16.msra.mxu0 %v349
    %510 = vmatpush.bf16.msra.mxu0 %v345
    %511 = vmatpush.bf16.msra.mxu0 %v341
    %512 = vmatpush.bf16.msra.mxu0 %v337
    %513 = vmatpush.bf16.msra.mxu0 %v333
    %514 = vmatpush.bf16.msra.mxu0 %v329
    %515 = vmatmul.bf16.gmra.mxu0 %v131
    %v516 = vpop.f32.mrf.mxu0
    %v517 = vadd.f32 %v122, %v516
    %v518 = vpop.f32.mrf.mxu0
    %519 = vdwg.mxu0
    %520 = vmatpush.bf16.msra.mxu0 %v389
    %521 = vmatpush.bf16.msra.mxu0 %v385
    %522 = vmatpush.bf16.msra.mxu0 %v381
    %523 = vmatpush.bf16.msra.mxu0 %v377
    %524 = vmatpush.bf16.msra.mxu0 %v373
    %525 = vmatpush.bf16.msra.mxu0 %v369
    %526 = vmatpush.bf16.msra.mxu0 %v365
    %527 = vmatpush.bf16.msra.mxu0 %v361
    %528 = vmatmul.bf16.gmra.mxu0 %v132
    %v529 = vpop.f32.mrf.mxu0
    %v530 = vadd.f32 %v517, %v529
    %v531 = vpop.f32.mrf.mxu0
    %532 = vdwg.mxu0
    %533 = vmatpush.bf16.msra.mxu0 %v358
    %534 = vmatpush.bf16.msra.mxu0 %v354
    %535 = vmatpush.bf16.msra.mxu0 %v350
    %536 = vmatpush.bf16.msra.mxu0 %v346
    %537 = vmatpush.bf16.msra.mxu0 %v342
    %538 = vmatpush.bf16.msra.mxu0 %v338
    %539 = vmatpush.bf16.msra.mxu0 %v334
    %540 = vmatpush.bf16.msra.mxu0 %v330
    %541 = vmatmul.bf16.gmra.mxu0 %v131
    %v542 = vpop.f32.mrf.mxu0
    %v543 = vadd.f32 %v123, %v542
    %v544 = vpop.f32.mrf.mxu0
    %545 = vdwg.mxu0
    %546 = vmatpush.bf16.msra.mxu0 %v390
    %547 = vmatpush.bf16.msra.mxu0 %v386
    %548 = vmatpush.bf16.msra.mxu0 %v382
    %549 = vmatpush.bf16.msra.mxu0 %v378
    %550 = vmatpush.bf16.msra.mxu0 %v374
    %551 = vmatpush.bf16.msra.mxu0 %v370
    %552 = vmatpush.bf16.msra.mxu0 %v366
    %553 = vmatpush.bf16.msra.mxu0 %v362
    %554 = vmatmul.bf16.gmra.mxu0 %v132
    %v555 = vpop.f32.mrf.mxu0
    %v556 = vadd.f32 %v543, %v555
    %v557 = vpop.f32.mrf.mxu0
    %558 = vdwg.mxu0
    %v559 = vxor.u32 %v478, 2147483648
    %v560 = vmul.f32 %v559, 1.442695
    %v561 = vpow.pop %v560
    %v562 = vadd.f32 %v561, 1.0
    %v563 = vrcp.pop %v562
    %v564 = vmul.f32 %v562, %v563
    %v565 = vsub.f32 1.0, %v564
    %v566 = vmul.f32 %v563, %v565
    %v567 = vadd.f32 %v563, %v566
    %vm568 = vweird.f32 %v562
    %vm569 = vweird.f32 %v563
    %vm570 = vmor %vm568, %vm569
    %v571 = vsel %vm570, %v563, %v567
    %v572 = vand.u32 2147483647, %v562
    %vm573 = vcmp.eq.f32.partialorder %v572, 8.507059e+37
    %v574 = vand.u32 %v562, 2147483648
    %v575 = vor.u32 1.1754944e-38, %v574
    %v576 = vsel %vm573, %v575, %v571
    %v577 = vmul.f32 1.0, %v576
    %v578 = vxor.u32 %v504, 2147483648
    %v579 = vmul.f32 %v578, 1.442695
    %v580 = vpow.pop %v579
    %v581 = vadd.f32 %v580, 1.0
    %v582 = vrcp.pop %v581
    %v583 = vmul.f32 %v581, %v582
    %v584 = vsub.f32 1.0, %v583
    %v585 = vmul.f32 %v582, %v584
    %v586 = vadd.f32 %v582, %v585
    %vm587 = vweird.f32 %v581
    %vm588 = vweird.f32 %v582
    %vm589 = vmor %vm587, %vm588
    %v590 = vsel %vm589, %v582, %v586
    %v591 = vand.u32 2147483647, %v581
    %vm592 = vcmp.eq.f32.partialorder %v591, 8.507059e+37
    %v593 = vand.u32 %v581, 2147483648
    %v594 = vor.u32 1.1754944e-38, %v593
    %v595 = vsel %vm592, %v594, %v590
    %v596 = vmul.f32 1.0, %v595
    %v597 = vtanh.pop %v530
    %v598 = vxor.u32 %v556, 2147483648
    %v599 = vmul.f32 %v598, 1.442695
    %v600 = vpow.pop %v599
    %v601 = vadd.f32 %v600, 1.0
    %v602 = vrcp.pop %v601
    %v603 = vmul.f32 %v601, %v602
    %v604 = vsub.f32 1.0, %v603
    %v605 = vmul.f32 %v602, %v604
    %v606 = vadd.f32 %v602, %v605
    %vm607 = vweird.f32 %v601
    %vm608 = vweird.f32 %v602
    %vm609 = vmor %vm607, %vm608
    %v610 = vsel %vm609, %v602, %v606
    %v611 = vand.u32 2147483647, %v601
    %vm612 = vcmp.eq.f32.partialorder %v611, 8.507059e+37
    %v613 = vand.u32 %v601, 2147483648
    %v614 = vor.u32 1.1754944e-38, %v613
    %v615 = vsel %vm612, %v614, %v610
    %v616 = vmul.f32 1.0, %v615
    %v617 = vld [vmem:[%s2] sm:$0xff]
    %v618 = vmul.f32 %v596, %v617
    %v619 = vmul.f32 %v577, %v597
    %v620 = vadd.f32 %v618, %v619
    %v621 = vtanh.pop %v620
    %v622 = vmul.f32 %v616, %v621
    %623 = vst [vmem:[#allocation7] sm:$0xff] %v622
    %624 = vst [vmem:[#allocation9] sm:$0xff] %v620
    %v625 = vpack.c.bf16 %v622, %v622
    %626 = vst [vmem:[#allocation2] sm:$0xf] %v625
    %s627 = scalar_lea.vmem %s1, 8
    %v628 = vld [vmem:[%s627] sm:$0xff]
    %v629 = vpack.c.bf16 %v628, %v628
    %630 = vst [vmem:[#allocation2 + $0x4] sm:$0xf] %v629
    %v631 = vld [vmem:[#allocation2] sm:$0xff]
    %s632 = scalar_lea.vmem [#allocation3], 512
    %v633 = vld [vmem:[%s632] sm:$0xff]
    %v634 = vld [vmem:[%s632 + $0x8] sm:$0xff]
    %v635 = vld [vmem:[%s632 + $0x10] sm:$0xff]
    %v636 = vld [vmem:[%s632 + $0x18] sm:$0xff]
    %v637 = vld [vmem:[%s632 + $0x20] sm:$0xff]
    %v638 = vld [vmem:[%s632 + $0x28] sm:$0xff]
    %v639 = vld [vmem:[%s632 + $0x30] sm:$0xff]
    %v640 = vld [vmem:[%s632 + $0x38] sm:$0xff]
    %v641 = vld [vmem:[%s632 + $0x40] sm:$0xff]
    %v642 = vld [vmem:[%s632 + $0x48] sm:$0xff]
    %v643 = vld [vmem:[%s632 + $0x50] sm:$0xff]
    %v644 = vld [vmem:[%s632 + $0x58] sm:$0xff]
    %v645 = vld [vmem:[%s632 + $0x60] sm:$0xff]
    %v646 = vld [vmem:[%s632 + $0x68] sm:$0xff]
    %v647 = vld [vmem:[%s632 + $0x70] sm:$0xff]
    %v648 = vld [vmem:[%s632 + $0x78] sm:$0xff]
    %v649 = vld [vmem:[%s632 + $0x80] sm:$0xff]
    %v650 = vld [vmem:[%s632 + $0x88] sm:$0xff]
    %v651 = vld [vmem:[%s632 + $0x90] sm:$0xff]
    %v652 = vld [vmem:[%s632 + $0x98] sm:$0xff]
    %v653 = vld [vmem:[%s632 + $0xa0] sm:$0xff]
    %v654 = vld [vmem:[%s632 + $0xa8] sm:$0xff]
    %v655 = vld [vmem:[%s632 + $0xb0] sm:$0xff]
    %v656 = vld [vmem:[%s632 + $0xb8] sm:$0xff]
    %v657 = vld [vmem:[%s632 + $0xc0] sm:$0xff]
    %v658 = vld [vmem:[%s632 + $0xc8] sm:$0xff]
    %v659 = vld [vmem:[%s632 + $0xd0] sm:$0xff]
    %v660 = vld [vmem:[%s632 + $0xd8] sm:$0xff]
    %v661 = vld [vmem:[%s632 + $0xe0] sm:$0xff]
    %v662 = vld [vmem:[%s632 + $0xe8] sm:$0xff]
    %v663 = vld [vmem:[%s632 + $0xf0] sm:$0xff]
    %v664 = vld [vmem:[%s632 + $0xf8] sm:$0xff]
    %v665 = vld [vmem:[%s632 + $0x100] sm:$0xff]
    %v666 = vld [vmem:[%s632 + $0x108] sm:$0xff]
    %v667 = vld [vmem:[%s632 + $0x110] sm:$0xff]
    %v668 = vld [vmem:[%s632 + $0x118] sm:$0xff]
    %v669 = vld [vmem:[%s632 + $0x120] sm:$0xff]
    %v670 = vld [vmem:[%s632 + $0x128] sm:$0xff]
    %v671 = vld [vmem:[%s632 + $0x130] sm:$0xff]
    %v672 = vld [vmem:[%s632 + $0x138] sm:$0xff]
    %v673 = vld [vmem:[%s632 + $0x140] sm:$0xff]
    %v674 = vld [vmem:[%s632 + $0x148] sm:$0xff]
    %v675 = vld [vmem:[%s632 + $0x150] sm:$0xff]
    %v676 = vld [vmem:[%s632 + $0x158] sm:$0xff]
    %v677 = vld [vmem:[%s632 + $0x160] sm:$0xff]
    %v678 = vld [vmem:[%s632 + $0x168] sm:$0xff]
    %v679 = vld [vmem:[%s632 + $0x170] sm:$0xff]
    %v680 = vld [vmem:[%s632 + $0x178] sm:$0xff]
    %v681 = vld [vmem:[%s632 + $0x180] sm:$0xff]
    %v682 = vld [vmem:[%s632 + $0x188] sm:$0xff]
    %v683 = vld [vmem:[%s632 + $0x190] sm:$0xff]
    %v684 = vld [vmem:[%s632 + $0x198] sm:$0xff]
    %v685 = vld [vmem:[%s632 + $0x1a0] sm:$0xff]
    %v686 = vld [vmem:[%s632 + $0x1a8] sm:$0xff]
    %v687 = vld [vmem:[%s632 + $0x1b0] sm:$0xff]
    %v688 = vld [vmem:[%s632 + $0x1b8] sm:$0xff]
    %v689 = vld [vmem:[%s632 + $0x1c0] sm:$0xff]
    %v690 = vld [vmem:[%s632 + $0x1c8] sm:$0xff]
    %v691 = vld [vmem:[%s632 + $0x1d0] sm:$0xff]
    %v692 = vld [vmem:[%s632 + $0x1d8] sm:$0xff]
    %v693 = vld [vmem:[%s632 + $0x1e0] sm:$0xff]
    %v694 = vld [vmem:[%s632 + $0x1e8] sm:$0xff]
    %v695 = vld [vmem:[%s632 + $0x1f0] sm:$0xff]
    %v696 = vld [vmem:[%s632 + $0x1f8] sm:$0xff]
    %s697 = scalar_lea.vmem %s4, 4
    %v698 = vld [vmem:[%s697] sm:$0xf]
    %v700 = vperm.slane %v698, 0
    %v701 = vperm.slane %v698, 1
    %v702 = vperm.slane %v698, 2
    %v703 = vperm.slane %v698, 3
    %v709 = vunpack.c.l.b16 %v631
    %v710 = vunpack.c.h.b16 %v631
    %v711 = vpack.c.b16 %v709, %v709
    %v712 = vpack.c.b16 %v710, %v710
    %v779 = vunpack.c.l.b16 %v633
    %v780 = vunpack.c.h.b16 %v633
    %v781 = vunpack.c.l.b16 %v634
    %v782 = vunpack.c.h.b16 %v634
    %v783 = vunpack.c.l.b16 %v635
    %v784 = vunpack.c.h.b16 %v635
    %v785 = vunpack.c.l.b16 %v636
    %v786 = vunpack.c.h.b16 %v636
    %v787 = vunpack.c.l.b16 %v637
    %v788 = vunpack.c.h.b16 %v637
    %v789 = vunpack.c.l.b16 %v638
    %v790 = vunpack.c.h.b16 %v638
    %v791 = vunpack.c.l.b16 %v639
    %v792 = vunpack.c.h.b16 %v639
    %v793 = vunpack.c.l.b16 %v640
    %v794 = vunpack.c.h.b16 %v640
    %v795 = vunpack.c.l.b16 %v641
    %v796 = vunpack.c.h.b16 %v641
    %v797 = vunpack.c.l.b16 %v642
    %v798 = vunpack.c.h.b16 %v642
    %v799 = vunpack.c.l.b16 %v643
    %v800 = vunpack.c.h.b16 %v643
    %v801 = vunpack.c.l.b16 %v644
    %v802 = vunpack.c.h.b16 %v644
    %v803 = vunpack.c.l.b16 %v645
    %v804 = vunpack.c.h.b16 %v645
    %v805 = vunpack.c.l.b16 %v646
    %v806 = vunpack.c.h.b16 %v646
    %v807 = vunpack.c.l.b16 %v647
    %v808 = vunpack.c.h.b16 %v647
    %v809 = vunpack.c.l.b16 %v648
    %v810 = vunpack.c.h.b16 %v648
    %v811 = vunpack.c.l.b16 %v649
    %v812 = vunpack.c.h.b16 %v649
    %v813 = vunpack.c.l.b16 %v650
    %v814 = vunpack.c.h.b16 %v650
    %v815 = vunpack.c.l.b16 %v651
    %v816 = vunpack.c.h.b16 %v651
    %v817 = vunpack.c.l.b16 %v652
    %v818 = vunpack.c.h.b16 %v652
    %v819 = vunpack.c.l.b16 %v653
    %v820 = vunpack.c.h.b16 %v653
    %v821 = vunpack.c.l.b16 %v654
    %v822 = vunpack.c.h.b16 %v654
    %v823 = vunpack.c.l.b16 %v655
    %v824 = vunpack.c.h.b16 %v655
    %v825 = vunpack.c.l.b16 %v656
    %v826 = vunpack.c.h.b16 %v656
    %v827 = vunpack.c.l.b16 %v657
    %v828 = vunpack.c.h.b16 %v657
    %v829 = vunpack.c.l.b16 %v658
    %v830 = vunpack.c.h.b16 %v658
    %v831 = vunpack.c.l.b16 %v659
    %v832 = vunpack.c.h.b16 %v659
    %v833 = vunpack.c.l.b16 %v660
    %v834 = vunpack.c.h.b16 %v660
    %v835 = vunpack.c.l.b16 %v661
    %v836 = vunpack.c.h.b16 %v661
    %v837 = vunpack.c.l.b16 %v662
    %v838 = vunpack.c.h.b16 %v662
    %v839 = vunpack.c.l.b16 %v663
    %v840 = vunpack.c.h.b16 %v663
    %v841 = vunpack.c.l.b16 %v664
    %v842 = vunpack.c.h.b16 %v664
    %v843 = vunpack.c.l.b16 %v665
    %v844 = vunpack.c.h.b16 %v665
    %v845 = vunpack.c.l.b16 %v666
    %v846 = vunpack.c.h.b16 %v666
    %v847 = vunpack.c.l.b16 %v667
    %v848 = vunpack.c.h.b16 %v667
    %v849 = vunpack.c.l.b16 %v668
    %v850 = vunpack.c.h.b16 %v668
    %v851 = vunpack.c.l.b16 %v669
    %v852 = vunpack.c.h.b16 %v669
    %v853 = vunpack.c.l.b16 %v670
    %v854 = vunpack.c.h.b16 %v670
    %v855 = vunpack.c.l.b16 %v671
    %v856 = vunpack.c.h.b16 %v671
    %v857 = vunpack.c.l.b16 %v672
    %v858 = vunpack.c.h.b16 %v672
    %v859 = vunpack.c.l.b16 %v673
    %v860 = vunpack.c.h.b16 %v673
    %v861 = vunpack.c.l.b16 %v674
    %v862 = vunpack.c.h.b16 %v674
    %v863 = vunpack.c.l.b16 %v675
    %v864 = vunpack.c.h.b16 %v675
    %v865 = vunpack.c.l.b16 %v676
    %v866 = vunpack.c.h.b16 %v676
    %v867 = vunpack.c.l.b16 %v677
    %v868 = vunpack.c.h.b16 %v677
    %v869 = vunpack.c.l.b16 %v678
    %v870 = vunpack.c.h.b16 %v678
    %v871 = vunpack.c.l.b16 %v679
    %v872 = vunpack.c.h.b16 %v679
    %v873 = vunpack.c.l.b16 %v680
    %v874 = vunpack.c.h.b16 %v680
    %v875 = vunpack.c.l.b16 %v681
    %v876 = vunpack.c.h.b16 %v681
    %v877 = vunpack.c.l.b16 %v682
    %v878 = vunpack.c.h.b16 %v682
    %v879 = vunpack.c.l.b16 %v683
    %v880 = vunpack.c.h.b16 %v683
    %v881 = vunpack.c.l.b16 %v684
    %v882 = vunpack.c.h.b16 %v684
    %v883 = vunpack.c.l.b16 %v685
    %v884 = vunpack.c.h.b16 %v685
    %v885 = vunpack.c.l.b16 %v686
    %v886 = vunpack.c.h.b16 %v686
    %v887 = vunpack.c.l.b16 %v687
    %v888 = vunpack.c.h.b16 %v687
    %v889 = vunpack.c.l.b16 %v688
    %v890 = vunpack.c.h.b16 %v688
    %v891 = vunpack.c.l.b16 %v689
    %v892 = vunpack.c.h.b16 %v689
    %v893 = vunpack.c.l.b16 %v690
    %v894 = vunpack.c.h.b16 %v690
    %v895 = vunpack.c.l.b16 %v691
    %v896 = vunpack.c.h.b16 %v691
    %v897 = vunpack.c.l.b16 %v692
    %v898 = vunpack.c.h.b16 %v692
    %v899 = vunpack.c.l.b16 %v693
    %v900 = vunpack.c.h.b16 %v693
    %v901 = vunpack.c.l.b16 %v694
    %v902 = vunpack.c.h.b16 %v694
    %v903 = vunpack.c.l.b16 %v695
    %v904 = vunpack.c.h.b16 %v695
    %v905 = vunpack.c.l.b16 %v696
    %v906 = vunpack.c.h.b16 %v696
    %v907 = vpack.c.b16 %v783, %v779
    %v908 = vpack.c.b16 %v784, %v780
    %v909 = vpack.c.b16 %v785, %v781
    %v910 = vpack.c.b16 %v786, %v782
    %v911 = vpack.c.b16 %v791, %v787
    %v912 = vpack.c.b16 %v792, %v788
    %v913 = vpack.c.b16 %v793, %v789
    %v914 = vpack.c.b16 %v794, %v790
    %v915 = vpack.c.b16 %v799, %v795
    %v916 = vpack.c.b16 %v800, %v796
    %v917 = vpack.c.b16 %v801, %v797
    %v918 = vpack.c.b16 %v802, %v798
    %v919 = vpack.c.b16 %v807, %v803
    %v920 = vpack.c.b16 %v808, %v804
    %v921 = vpack.c.b16 %v809, %v805
    %v922 = vpack.c.b16 %v810, %v806
    %v923 = vpack.c.b16 %v815, %v811
    %v924 = vpack.c.b16 %v816, %v812
    %v925 = vpack.c.b16 %v817, %v813
    %v926 = vpack.c.b16 %v818, %v814
    %v927 = vpack.c.b16 %v823, %v819
    %v928 = vpack.c.b16 %v824, %v820
    %v929 = vpack.c.b16 %v825, %v821
    %v930 = vpack.c.b16 %v826, %v822
    %v931 = vpack.c.b16 %v831, %v827
    %v932 = vpack.c.b16 %v832, %v828
    %v933 = vpack.c.b16 %v833, %v829
    %v934 = vpack.c.b16 %v834, %v830
    %v935 = vpack.c.b16 %v839, %v835
    %v936 = vpack.c.b16 %v840, %v836
    %v937 = vpack.c.b16 %v841, %v837
    %v938 = vpack.c.b16 %v842, %v838
    %v939 = vpack.c.b16 %v847, %v843
    %v940 = vpack.c.b16 %v848, %v844
    %v941 = vpack.c.b16 %v849, %v845
    %v942 = vpack.c.b16 %v850, %v846
    %v943 = vpack.c.b16 %v855, %v851
    %v944 = vpack.c.b16 %v856, %v852
    %v945 = vpack.c.b16 %v857, %v853
    %v946 = vpack.c.b16 %v858, %v854
    %v947 = vpack.c.b16 %v863, %v859
    %v948 = vpack.c.b16 %v864, %v860
    %v949 = vpack.c.b16 %v865, %v861
    %v950 = vpack.c.b16 %v866, %v862
    %v951 = vpack.c.b16 %v871, %v867
    %v952 = vpack.c.b16 %v872, %v868
    %v953 = vpack.c.b16 %v873, %v869
    %v954 = vpack.c.b16 %v874, %v870
    %v955 = vpack.c.b16 %v879, %v875
    %v956 = vpack.c.b16 %v880, %v876
    %v957 = vpack.c.b16 %v881, %v877
    %v958 = vpack.c.b16 %v882, %v878
    %v959 = vpack.c.b16 %v887, %v883
    %v960 = vpack.c.b16 %v888, %v884
    %v961 = vpack.c.b16 %v889, %v885
    %v962 = vpack.c.b16 %v890, %v886
    %v963 = vpack.c.b16 %v895, %v891
    %v964 = vpack.c.b16 %v896, %v892
    %v965 = vpack.c.b16 %v897, %v893
    %v966 = vpack.c.b16 %v898, %v894
    %v967 = vpack.c.b16 %v903, %v899
    %v968 = vpack.c.b16 %v904, %v900
    %v969 = vpack.c.b16 %v905, %v901
    %v970 = vpack.c.b16 %v906, %v902
    %1035 = vmatpush.bf16.msra.mxu0 %v935
    %1036 = vmatpush.bf16.msra.mxu0 %v931
    %1037 = vmatpush.bf16.msra.mxu0 %v927
    %1038 = vmatpush.bf16.msra.mxu0 %v923
    %1039 = vmatpush.bf16.msra.mxu0 %v919
    %1040 = vmatpush.bf16.msra.mxu0 %v915
    %1041 = vmatpush.bf16.msra.mxu0 %v911
    %1042 = vmatpush.bf16.msra.mxu0 %v907
    %1043 = vmatmul.bf16.gmra.mxu0 %v711
    %v1044 = vpop.f32.mrf.mxu0
    %v1045 = vadd.f32 %v700, %v1044
    %v1046 = vpop.f32.mrf.mxu0
    %1047 = vdwg.mxu0
    %1048 = vmatpush.bf16.msra.mxu0 %v967
    %1049 = vmatpush.bf16.msra.mxu0 %v963
    %1050 = vmatpush.bf16.msra.mxu0 %v959
    %1051 = vmatpush.bf16.msra.mxu0 %v955
    %1052 = vmatpush.bf16.msra.mxu0 %v951
    %1053 = vmatpush.bf16.msra.mxu0 %v947
    %1054 = vmatpush.bf16.msra.mxu0 %v943
    %1055 = vmatpush.bf16.msra.mxu0 %v939
    %1056 = vmatmul.bf16.gmra.mxu0 %v712
    %v1057 = vpop.f32.mrf.mxu0
    %v1058 = vadd.f32 %v1045, %v1057
    %v1059 = vpop.f32.mrf.mxu0
    %1060 = vdwg.mxu0
    %1061 = vmatpush.bf16.msra.mxu0 %v936
    %1062 = vmatpush.bf16.msra.mxu0 %v932
    %1063 = vmatpush.bf16.msra.mxu0 %v928
    %1064 = vmatpush.bf16.msra.mxu0 %v924
    %1065 = vmatpush.bf16.msra.mxu0 %v920
    %1066 = vmatpush.bf16.msra.mxu0 %v916
    %1067 = vmatpush.bf16.msra.mxu0 %v912
    %1068 = vmatpush.bf16.msra.mxu0 %v908
    %1069 = vmatmul.bf16.gmra.mxu0 %v711
    %v1070 = vpop.f32.mrf.mxu0
    %v1071 = vadd.f32 %v701, %v1070
    %v1072 = vpop.f32.mrf.mxu0
    %1073 = vdwg.mxu0
    %1074 = vmatpush.bf16.msra.mxu0 %v968
    %1075 = vmatpush.bf16.msra.mxu0 %v964
    %1076 = vmatpush.bf16.msra.mxu0 %v960
    %1077 = vmatpush.bf16.msra.mxu0 %v956
    %1078 = vmatpush.bf16.msra.mxu0 %v952
    %1079 = vmatpush.bf16.msra.mxu0 %v948
    %1080 = vmatpush.bf16.msra.mxu0 %v944
    %1081 = vmatpush.bf16.msra.mxu0 %v940
    %1082 = vmatmul.bf16.gmra.mxu0 %v712
    %v1083 = vpop.f32.mrf.mxu0
    %v1084 = vadd.f32 %v1071, %v1083
    %v1085 = vpop.f32.mrf.mxu0
    %1086 = vdwg.mxu0
    %1087 = vmatpush.bf16.msra.mxu0 %v937
    %1088 = vmatpush.bf16.msra.mxu0 %v933
    %1089 = vmatpush.bf16.msra.mxu0 %v929
    %1090 = vmatpush.bf16.msra.mxu0 %v925
    %1091 = vmatpush.bf16.msra.mxu0 %v921
    %1092 = vmatpush.bf16.msra.mxu0 %v917
    %1093 = vmatpush.bf16.msra.mxu0 %v913
    %1094 = vmatpush.bf16.msra.mxu0 %v909
    %1095 = vmatmul.bf16.gmra.mxu0 %v711
    %v1096 = vpop.f32.mrf.mxu0
    %v1097 = vadd.f32 %v702, %v1096
    %v1098 = vpop.f32.mrf.mxu0
    %1099 = vdwg.mxu0
    %1100 = vmatpush.bf16.msra.mxu0 %v969
    %1101 = vmatpush.bf16.msra.mxu0 %v965
    %1102 = vmatpush.bf16.msra.mxu0 %v961
    %1103 = vmatpush.bf16.msra.mxu0 %v957
    %1104 = vmatpush.bf16.msra.mxu0 %v953
    %1105 = vmatpush.bf16.msra.mxu0 %v949
    %1106 = vmatpush.bf16.msra.mxu0 %v945
    %1107 = vmatpush.bf16.msra.mxu0 %v941
    %1108 = vmatmul.bf16.gmra.mxu0 %v712
    %v1109 = vpop.f32.mrf.mxu0
    %v1110 = vadd.f32 %v1097, %v1109
    %v1111 = vpop.f32.mrf.mxu0
    %1112 = vdwg.mxu0
    %1113 = vmatpush.bf16.msra.mxu0 %v938
    %1114 = vmatpush.bf16.msra.mxu0 %v934
    %1115 = vmatpush.bf16.msra.mxu0 %v930
    %1116 = vmatpush.bf16.msra.mxu0 %v926
    %1117 = vmatpush.bf16.msra.mxu0 %v922
    %1118 = vmatpush.bf16.msra.mxu0 %v918
    %1119 = vmatpush.bf16.msra.mxu0 %v914
    %1120 = vmatpush.bf16.msra.mxu0 %v910
    %1121 = vmatmul.bf16.gmra.mxu0 %v711
    %v1122 = vpop.f32.mrf.mxu0
    %v1123 = vadd.f32 %v703, %v1122
    %v1124 = vpop.f32.mrf.mxu0
    %1125 = vdwg.mxu0
    %1126 = vmatpush.bf16.msra.mxu0 %v970
    %1127 = vmatpush.bf16.msra.mxu0 %v966
    %1128 = vmatpush.bf16.msra.mxu0 %v962
    %1129 = vmatpush.bf16.msra.mxu0 %v958
    %1130 = vmatpush.bf16.msra.mxu0 %v954
    %1131 = vmatpush.bf16.msra.mxu0 %v950
    %1132 = vmatpush.bf16.msra.mxu0 %v946
    %1133 = vmatpush.bf16.msra.mxu0 %v942
    %1134 = vmatmul.bf16.gmra.mxu0 %v712
    %v1135 = vpop.f32.mrf.mxu0
    %v1136 = vadd.f32 %v1123, %v1135
    %v1137 = vpop.f32.mrf.mxu0
    %1138 = vdwg.mxu0
    %v1139 = vxor.u32 %v1058, 2147483648
    %v1140 = vmul.f32 %v1139, 1.442695
    %v1141 = vpow.pop %v1140
    %v1142 = vadd.f32 %v1141, 1.0
    %v1143 = vrcp.pop %v1142
    %v1144 = vmul.f32 %v1142, %v1143
    %v1145 = vsub.f32 1.0, %v1144
    %v1146 = vmul.f32 %v1143, %v1145
    %v1147 = vadd.f32 %v1143, %v1146
    %vm1148 = vweird.f32 %v1142
    %vm1149 = vweird.f32 %v1143
    %vm1150 = vmor %vm1148, %vm1149
    %v1151 = vsel %vm1150, %v1143, %v1147
    %v1152 = vand.u32 2147483647, %v1142
    %vm1153 = vcmp.eq.f32.partialorder %v1152, 8.507059e+37
    %v1154 = vand.u32 %v1142, 2147483648
    %v1155 = vor.u32 1.1754944e-38, %v1154
    %v1156 = vsel %vm1153, %v1155, %v1151
    %v1157 = vmul.f32 1.0, %v1156
    %v1158 = vxor.u32 %v1084, 2147483648
    %v1159 = vmul.f32 %v1158, 1.442695
    %v1160 = vpow.pop %v1159
    %v1161 = vadd.f32 %v1160, 1.0
    %v1162 = vrcp.pop %v1161
    %v1163 = vmul.f32 %v1161, %v1162
    %v1164 = vsub.f32 1.0, %v1163
    %v1165 = vmul.f32 %v1162, %v1164
    %v1166 = vadd.f32 %v1162, %v1165
    %vm1167 = vweird.f32 %v1161
    %vm1168 = vweird.f32 %v1162
    %vm1169 = vmor %vm1167, %vm1168
    %v1170 = vsel %vm1169, %v1162, %v1166
    %v1171 = vand.u32 2147483647, %v1161
    %vm1172 = vcmp.eq.f32.partialorder %v1171, 8.507059e+37
    %v1173 = vand.u32 %v1161, 2147483648
    %v1174 = vor.u32 1.1754944e-38, %v1173
    %v1175 = vsel %vm1172, %v1174, %v1170
    %v1176 = vmul.f32 1.0, %v1175
    %v1177 = vtanh.pop %v1110
    %v1178 = vxor.u32 %v1136, 2147483648
    %v1179 = vmul.f32 %v1178, 1.442695
    %v1180 = vpow.pop %v1179
    %v1181 = vadd.f32 %v1180, 1.0
    %v1182 = vrcp.pop %v1181
    %v1183 = vmul.f32 %v1181, %v1182
    %v1184 = vsub.f32 1.0, %v1183
    %v1185 = vmul.f32 %v1182, %v1184
    %v1186 = vadd.f32 %v1182, %v1185
    %vm1187 = vweird.f32 %v1181
    %vm1188 = vweird.f32 %v1182
    %vm1189 = vmor %vm1187, %vm1188
    %v1190 = vsel %vm1189, %v1182, %v1186
    %v1191 = vand.u32 2147483647, %v1181
    %vm1192 = vcmp.eq.f32.partialorder %v1191, 8.507059e+37
    %v1193 = vand.u32 %v1181, 2147483648
    %v1194 = vor.u32 1.1754944e-38, %v1193
    %v1195 = vsel %vm1192, %v1194, %v1190
    %v1196 = vmul.f32 1.0, %v1195
    %s1197 = scalar_lea.vmem %s2, 8
    %v1198 = vld [vmem:[%s1197] sm:$0xff]
    %v1199 = vmul.f32 %v1176, %v1198
    %v1200 = vmul.f32 %v1157, %v1177
    %v1201 = vadd.f32 %v1199, %v1200
    %v1202 = vtanh.pop %v1201
    %v1203 = vmul.f32 %v1196, %v1202
    %s1204 = scalar_lea.vmem [#allocation7], 8
    %1205 = vst [vmem:[%s1204] sm:$0xff] %v1203
    %s1206 = scalar_lea.vmem [#allocation9], 8
    %1207 = vst [vmem:[%s1206] sm:$0xff] %v1201
    %v1208 = vpack.c.bf16 %v1203, %v1203
    %1209 = vst [vmem:[#allocation2] sm:$0xf] %v1208
    %s1210 = scalar_lea.vmem %s1, 16
    %v1211 = vld [vmem:[%s1210] sm:$0xff]
    %v1212 = vpack.c.bf16 %v1211, %v1211
    %1213 = vst [vmem:[#allocation2 + $0x4] sm:$0xf] %v1212
    %v1214 = vld [vmem:[#allocation2] sm:$0xff]
    %s1215 = scalar_lea.vmem [#allocation3], 1024
    %v1216 = vld [vmem:[%s1215] sm:$0xff]
    %v1217 = vld [vmem:[%s1215 + $0x8] sm:$0xff]
    %v1218 = vld [vmem:[%s1215 + $0x10] sm:$0xff]
    %v1219 = vld [vmem:[%s1215 + $0x18] sm:$0xff]
    %v1220 = vld [vmem:[%s1215 + $0x20] sm:$0xff]
    %v1221 = vld [vmem:[%s1215 + $0x28] sm:$0xff]
    %v1222 = vld [vmem:[%s1215 + $0x30] sm:$0xff]
    %v1223 = vld [vmem:[%s1215 + $0x38] sm:$0xff]
    %v1224 = vld [vmem:[%s1215 + $0x40] sm:$0xff]
    %v1225 = vld [vmem:[%s1215 + $0x48] sm:$0xff]
    %v1226 = vld [vmem:[%s1215 + $0x50] sm:$0xff]
    %v1227 = vld [vmem:[%s1215 + $0x58] sm:$0xff]
    %v1228 = vld [vmem:[%s1215 + $0x60] sm:$0xff]
    %v1229 = vld [vmem:[%s1215 + $0x68] sm:$0xff]
    %v1230 = vld [vmem:[%s1215 + $0x70] sm:$0xff]
    %v1231 = vld [vmem:[%s1215 + $0x78] sm:$0xff]
    %v1232 = vld [vmem:[%s1215 + $0x80] sm:$0xff]
    %v1233 = vld [vmem:[%s1215 + $0x88] sm:$0xff]
    %v1234 = vld [vmem:[%s1215 + $0x90] sm:$0xff]
    %v1235 = vld [vmem:[%s1215 + $0x98] sm:$0xff]
    %v1236 = vld [vmem:[%s1215 + $0xa0] sm:$0xff]
    %v1237 = vld [vmem:[%s1215 + $0xa8] sm:$0xff]
    %v1238 = vld [vmem:[%s1215 + $0xb0] sm:$0xff]
    %v1239 = vld [vmem:[%s1215 + $0xb8] sm:$0xff]
    %v1240 = vld [vmem:[%s1215 + $0xc0] sm:$0xff]
    %v1241 = vld [vmem:[%s1215 + $0xc8] sm:$0xff]
    %v1242 = vld [vmem:[%s1215 + $0xd0] sm:$0xff]
    %v1243 = vld [vmem:[%s1215 + $0xd8] sm:$0xff]
    %v1244 = vld [vmem:[%s1215 + $0xe0] sm:$0xff]
    %v1245 = vld [vmem:[%s1215 + $0xe8] sm:$0xff]
    %v1246 = vld [vmem:[%s1215 + $0xf0] sm:$0xff]
    %v1247 = vld [vmem:[%s1215 + $0xf8] sm:$0xff]
    %v1248 = vld [vmem:[%s1215 + $0x100] sm:$0xff]
    %v1249 = vld [vmem:[%s1215 + $0x108] sm:$0xff]
    %v1250 = vld [vmem:[%s1215 + $0x110] sm:$0xff]
    %v1251 = vld [vmem:[%s1215 + $0x118] sm:$0xff]
    %v1252 = vld [vmem:[%s1215 + $0x120] sm:$0xff]
    %v1253 = vld [vmem:[%s1215 + $0x128] sm:$0xff]
    %v1254 = vld [vmem:[%s1215 + $0x130] sm:$0xff]
    %v1255 = vld [vmem:[%s1215 + $0x138] sm:$0xff]
    %v1256 = vld [vmem:[%s1215 + $0x140] sm:$0xff]
    %v1257 = vld [vmem:[%s1215 + $0x148] sm:$0xff]
    %v1258 = vld [vmem:[%s1215 + $0x150] sm:$0xff]
    %v1259 = vld [vmem:[%s1215 + $0x158] sm:$0xff]
    %v1260 = vld [vmem:[%s1215 + $0x160] sm:$0xff]
    %v1261 = vld [vmem:[%s1215 + $0x168] sm:$0xff]
    %v1262 = vld [vmem:[%s1215 + $0x170] sm:$0xff]
    %v1263 = vld [vmem:[%s1215 + $0x178] sm:$0xff]
    %v1264 = vld [vmem:[%s1215 + $0x180] sm:$0xff]
    %v1265 = vld [vmem:[%s1215 + $0x188] sm:$0xff]
    %v1266 = vld [vmem:[%s1215 + $0x190] sm:$0xff]
    %v1267 = vld [vmem:[%s1215 + $0x198] sm:$0xff]
    %v1268 = vld [vmem:[%s1215 + $0x1a0] sm:$0xff]
    %v1269 = vld [vmem:[%s1215 + $0x1a8] sm:$0xff]
    %v1270 = vld [vmem:[%s1215 + $0x1b0] sm:$0xff]
    %v1271 = vld [vmem:[%s1215 + $0x1b8] sm:$0xff]
    %v1272 = vld [vmem:[%s1215 + $0x1c0] sm:$0xff]
    %v1273 = vld [vmem:[%s1215 + $0x1c8] sm:$0xff]
    %v1274 = vld [vmem:[%s1215 + $0x1d0] sm:$0xff]
    %v1275 = vld [vmem:[%s1215 + $0x1d8] sm:$0xff]
    %v1276 = vld [vmem:[%s1215 + $0x1e0] sm:$0xff]
    %v1277 = vld [vmem:[%s1215 + $0x1e8] sm:$0xff]
    %v1278 = vld [vmem:[%s1215 + $0x1f0] sm:$0xff]
    %v1279 = vld [vmem:[%s1215 + $0x1f8] sm:$0xff]
    %s1280 = scalar_lea.vmem %s4, 8
    %v1281 = vld [vmem:[%s1280] sm:$0xf]
    %v1283 = vperm.slane %v1281, 0
    %v1284 = vperm.slane %v1281, 1
    %v1285 = vperm.slane %v1281, 2
    %v1286 = vperm.slane %v1281, 3
    %v1292 = vunpack.c.l.b16 %v1214
    %v1293 = vunpack.c.h.b16 %v1214
    %v1294 = vpack.c.b16 %v1292, %v1292
    %v1295 = vpack.c.b16 %v1293, %v1293
    %v1362 = vunpack.c.l.b16 %v1216
    %v1363 = vunpack.c.h.b16 %v1216
    %v1364 = vunpack.c.l.b16 %v1217
    %v1365 = vunpack.c.h.b16 %v1217
    %v1366 = vunpack.c.l.b16 %v1218
    %v1367 = vunpack.c.h.b16 %v1218
    %v1368 = vunpack.c.l.b16 %v1219
    %v1369 = vunpack.c.h.b16 %v1219
    %v1370 = vunpack.c.l.b16 %v1220
    %v1371 = vunpack.c.h.b16 %v1220
    %v1372 = vunpack.c.l.b16 %v1221
    %v1373 = vunpack.c.h.b16 %v1221
    %v1374 = vunpack.c.l.b16 %v1222
    %v1375 = vunpack.c.h.b16 %v1222
    %v1376 = vunpack.c.l.b16 %v1223
    %v1377 = vunpack.c.h.b16 %v1223
    %v1378 = vunpack.c.l.b16 %v1224
    %v1379 = vunpack.c.h.b16 %v1224
    %v1380 = vunpack.c.l.b16 %v1225
    %v1381 = vunpack.c.h.b16 %v1225
    %v1382 = vunpack.c.l.b16 %v1226
    %v1383 = vunpack.c.h.b16 %v1226
    %v1384 = vunpack.c.l.b16 %v1227
    %v1385 = vunpack.c.h.b16 %v1227
    %v1386 = vunpack.c.l.b16 %v1228
    %v1387 = vunpack.c.h.b16 %v1228
    %v1388 = vunpack.c.l.b16 %v1229
    %v1389 = vunpack.c.h.b16 %v1229
    %v1390 = vunpack.c.l.b16 %v1230
    %v1391 = vunpack.c.h.b16 %v1230
    %v1392 = vunpack.c.l.b16 %v1231
    %v1393 = vunpack.c.h.b16 %v1231
    %v1394 = vunpack.c.l.b16 %v1232
    %v1395 = vunpack.c.h.b16 %v1232
    %v1396 = vunpack.c.l.b16 %v1233
    %v1397 = vunpack.c.h.b16 %v1233
    %v1398 = vunpack.c.l.b16 %v1234
    %v1399 = vunpack.c.h.b16 %v1234
    %v1400 = vunpack.c.l.b16 %v1235
    %v1401 = vunpack.c.h.b16 %v1235
    %v1402 = vunpack.c.l.b16 %v1236
    %v1403 = vunpack.c.h.b16 %v1236
    %v1404 = vunpack.c.l.b16 %v1237
    %v1405 = vunpack.c.h.b16 %v1237
    %v1406 = vunpack.c.l.b16 %v1238
    %v1407 = vunpack.c.h.b16 %v1238
    %v1408 = vunpack.c.l.b16 %v1239
    %v1409 = vunpack.c.h.b16 %v1239
    %v1410 = vunpack.c.l.b16 %v1240
    %v1411 = vunpack.c.h.b16 %v1240
    %v1412 = vunpack.c.l.b16 %v1241
    %v1413 = vunpack.c.h.b16 %v1241
    %v1414 = vunpack.c.l.b16 %v1242
    %v1415 = vunpack.c.h.b16 %v1242
    %v1416 = vunpack.c.l.b16 %v1243
    %v1417 = vunpack.c.h.b16 %v1243
    %v1418 = vunpack.c.l.b16 %v1244
    %v1419 = vunpack.c.h.b16 %v1244
    %v1420 = vunpack.c.l.b16 %v1245
    %v1421 = vunpack.c.h.b16 %v1245
    %v1422 = vunpack.c.l.b16 %v1246
    %v1423 = vunpack.c.h.b16 %v1246
    %v1424 = vunpack.c.l.b16 %v1247
    %v1425 = vunpack.c.h.b16 %v1247
    %v1426 = vunpack.c.l.b16 %v1248
    %v1427 = vunpack.c.h.b16 %v1248
    %v1428 = vunpack.c.l.b16 %v1249
    %v1429 = vunpack.c.h.b16 %v1249
    %v1430 = vunpack.c.l.b16 %v1250
    %v1431 = vunpack.c.h.b16 %v1250
    %v1432 = vunpack.c.l.b16 %v1251
    %v1433 = vunpack.c.h.b16 %v1251
    %v1434 = vunpack.c.l.b16 %v1252
    %v1435 = vunpack.c.h.b16 %v1252
    %v1436 = vunpack.c.l.b16 %v1253
    %v1437 = vunpack.c.h.b16 %v1253
    %v1438 = vunpack.c.l.b16 %v1254
    %v1439 = vunpack.c.h.b16 %v1254
    %v1440 = vunpack.c.l.b16 %v1255
    %v1441 = vunpack.c.h.b16 %v1255
    %v1442 = vunpack.c.l.b16 %v1256
    %v1443 = vunpack.c.h.b16 %v1256
    %v1444 = vunpack.c.l.b16 %v1257
    %v1445 = vunpack.c.h.b16 %v1257
    %v1446 = vunpack.c.l.b16 %v1258
    %v1447 = vunpack.c.h.b16 %v1258
    %v1448 = vunpack.c.l.b16 %v1259
    %v1449 = vunpack.c.h.b16 %v1259
    %v1450 = vunpack.c.l.b16 %v1260
    %v1451 = vunpack.c.h.b16 %v1260
    %v1452 = vunpack.c.l.b16 %v1261
    %v1453 = vunpack.c.h.b16 %v1261
    %v1454 = vunpack.c.l.b16 %v1262
    %v1455 = vunpack.c.h.b16 %v1262
    %v1456 = vunpack.c.l.b16 %v1263
    %v1457 = vunpack.c.h.b16 %v1263
    %v1458 = vunpack.c.l.b16 %v1264
    %v1459 = vunpack.c.h.b16 %v1264
    %v1460 = vunpack.c.l.b16 %v1265
    %v1461 = vunpack.c.h.b16 %v1265
    %v1462 = vunpack.c.l.b16 %v1266
    %v1463 = vunpack.c.h.b16 %v1266
    %v1464 = vunpack.c.l.b16 %v1267
    %v1465 = vunpack.c.h.b16 %v1267
    %v1466 = vunpack.c.l.b16 %v1268
    %v1467 = vunpack.c.h.b16 %v1268
    %v1468 = vunpack.c.l.b16 %v1269
    %v1469 = vunpack.c.h.b16 %v1269
    %v1470 = vunpack.c.l.b16 %v1270
    %v1471 = vunpack.c.h.b16 %v1270
    %v1472 = vunpack.c.l.b16 %v1271
    %v1473 = vunpack.c.h.b16 %v1271
    %v1474 = vunpack.c.l.b16 %v1272
    %v1475 = vunpack.c.h.b16 %v1272
    %v1476 = vunpack.c.l.b16 %v1273
    %v1477 = vunpack.c.h.b16 %v1273
    %v1478 = vunpack.c.l.b16 %v1274
    %v1479 = vunpack.c.h.b16 %v1274
    %v1480 = vunpack.c.l.b16 %v1275
    %v1481 = vunpack.c.h.b16 %v1275
    %v1482 = vunpack.c.l.b16 %v1276
    %v1483 = vunpack.c.h.b16 %v1276
    %v1484 = vunpack.c.l.b16 %v1277
    %v1485 = vunpack.c.h.b16 %v1277
    %v1486 = vunpack.c.l.b16 %v1278
    %v1487 = vunpack.c.h.b16 %v1278
    %v1488 = vunpack.c.l.b16 %v1279
    %v1489 = vunpack.c.h.b16 %v1279
    %v1490 = vpack.c.b16 %v1366, %v1362
    %v1491 = vpack.c.b16 %v1367, %v1363
    %v1492 = vpack.c.b16 %v1368, %v1364
    %v1493 = vpack.c.b16 %v1369, %v1365
    %v1494 = vpack.c.b16 %v1374, %v1370
    %v1495 = vpack.c.b16 %v1375, %v1371
    %v1496 = vpack.c.b16 %v1376, %v1372
    %v1497 = vpack.c.b16 %v1377, %v1373
    %v1498 = vpack.c.b16 %v1382, %v1378
    %v1499 = vpack.c.b16 %v1383, %v1379
    %v1500 = vpack.c.b16 %v1384, %v1380
    %v1501 = vpack.c.b16 %v1385, %v1381
    %v1502 = vpack.c.b16 %v1390, %v1386
    %v1503 = vpack.c.b16 %v1391, %v1387
    %v1504 = vpack.c.b16 %v1392, %v1388
    %v1505 = vpack.c.b16 %v1393, %v1389
    %v1506 = vpack.c.b16 %v1398, %v1394
    %v1507 = vpack.c.b16 %v1399, %v1395
    %v1508 = vpack.c.b16 %v1400, %v1396
    %v1509 = vpack.c.b16 %v1401, %v1397
    %v1510 = vpack.c.b16 %v1406, %v1402
    %v1511 = vpack.c.b16 %v1407, %v1403
    %v1512 = vpack.c.b16 %v1408, %v1404
    %v1513 = vpack.c.b16 %v1409, %v1405
    %v1514 = vpack.c.b16 %v1414, %v1410
    %v1515 = vpack.c.b16 %v1415, %v1411
    %v1516 = vpack.c.b16 %v1416, %v1412
    %v1517 = vpack.c.b16 %v1417, %v1413
    %v1518 = vpack.c.b16 %v1422, %v1418
    %v1519 = vpack.c.b16 %v1423, %v1419
    %v1520 = vpack.c.b16 %v1424, %v1420
    %v1521 = vpack.c.b16 %v1425, %v1421
    %v1522 = vpack.c.b16 %v1430, %v1426
    %v1523 = vpack.c.b16 %v1431, %v1427
    %v1524 = vpack.c.b16 %v1432, %v1428
    %v1525 = vpack.c.b16 %v1433, %v1429
    %v1526 = vpack.c.b16 %v1438, %v1434
    %v1527 = vpack.c.b16 %v1439, %v1435
    %v1528 = vpack.c.b16 %v1440, %v1436
    %v1529 = vpack.c.b16 %v1441, %v1437
    %v1530 = vpack.c.b16 %v1446, %v1442
    %v1531 = vpack.c.b16 %v1447, %v1443
    %v1532 = vpack.c.b16 %v1448, %v1444
    %v1533 = vpack.c.b16 %v1449, %v1445
    %v1534 = vpack.c.b16 %v1454, %v1450
    %v1535 = vpack.c.b16 %v1455, %v1451
    %v1536 = vpack.c.b16 %v1456, %v1452
    %v1537 = vpack.c.b16 %v1457, %v1453
    %v1538 = vpack.c.b16 %v1462, %v1458
    %v1539 = vpack.c.b16 %v1463, %v1459
    %v1540 = vpack.c.b16 %v1464, %v1460
    %v1541 = vpack.c.b16 %v1465, %v1461
    %v1542 = vpack.c.b16 %v1470, %v1466
    %v1543 = vpack.c.b16 %v1471, %v1467
    %v1544 = vpack.c.b16 %v1472, %v1468
    %v1545 = vpack.c.b16 %v1473, %v1469
    %v1546 = vpack.c.b16 %v1478, %v1474
    %v1547 = vpack.c.b16 %v1479, %v1475
    %v1548 = vpack.c.b16 %v1480, %v1476
    %v1549 = vpack.c.b16 %v1481, %v1477
    %v1550 = vpack.c.b16 %v1486, %v1482
    %v1551 = vpack.c.b16 %v1487, %v1483
    %v1552 = vpack.c.b16 %v1488, %v1484
    %v1553 = vpack.c.b16 %v1489, %v1485
    %1618 = vmatpush.bf16.msra.mxu0 %v1518
    %1619 = vmatpush.bf16.msra.mxu0 %v1514
    %1620 = vmatpush.bf16.msra.mxu0 %v1510
    %1621 = vmatpush.bf16.msra.mxu0 %v1506
    %1622 = vmatpush.bf16.msra.mxu0 %v1502
    %1623 = vmatpush.bf16.msra.mxu0 %v1498
    %1624 = vmatpush.bf16.msra.mxu0 %v1494
    %1625 = vmatpush.bf16.msra.mxu0 %v1490
    %1626 = vmatmul.bf16.gmra.mxu0 %v1294
    %v1627 = vpop.f32.mrf.mxu0
    %v1628 = vadd.f32 %v1283, %v1627
    %v1629 = vpop.f32.mrf.mxu0
    %1630 = vdwg.mxu0
    %1631 = vmatpush.bf16.msra.mxu0 %v1550
    %1632 = vmatpush.bf16.msra.mxu0 %v1546
    %1633 = vmatpush.bf16.msra.mxu0 %v1542
    %1634 = vmatpush.bf16.msra.mxu0 %v1538
    %1635 = vmatpush.bf16.msra.mxu0 %v1534
    %1636 = vmatpush.bf16.msra.mxu0 %v1530
    %1637 = vmatpush.bf16.msra.mxu0 %v1526
    %1638 = vmatpush.bf16.msra.mxu0 %v1522
    %1639 = vmatmul.bf16.gmra.mxu0 %v1295
    %v1640 = vpop.f32.mrf.mxu0
    %v1641 = vadd.f32 %v1628, %v1640
    %v1642 = vpop.f32.mrf.mxu0
    %1643 = vdwg.mxu0
    %1644 = vmatpush.bf16.msra.mxu0 %v1519
    %1645 = vmatpush.bf16.msra.mxu0 %v1515
    %1646 = vmatpush.bf16.msra.mxu0 %v1511
    %1647 = vmatpush.bf16.msra.mxu0 %v1507
    %1648 = vmatpush.bf16.msra.mxu0 %v1503
    %1649 = vmatpush.bf16.msra.mxu0 %v1499
    %1650 = vmatpush.bf16.msra.mxu0 %v1495
    %1651 = vmatpush.bf16.msra.mxu0 %v1491
    %1652 = vmatmul.bf16.gmra.mxu0 %v1294
    %v1653 = vpop.f32.mrf.mxu0
    %v1654 = vadd.f32 %v1284, %v1653
    %v1655 = vpop.f32.mrf.mxu0
    %1656 = vdwg.mxu0
    %1657 = vmatpush.bf16.msra.mxu0 %v1551
    %1658 = vmatpush.bf16.msra.mxu0 %v1547
    %1659 = vmatpush.bf16.msra.mxu0 %v1543
    %1660 = vmatpush.bf16.msra.mxu0 %v1539
    %1661 = vmatpush.bf16.msra.mxu0 %v1535
    %1662 = vmatpush.bf16.msra.mxu0 %v1531
    %1663 = vmatpush.bf16.msra.mxu0 %v1527
    %1664 = vmatpush.bf16.msra.mxu0 %v1523
    %1665 = vmatmul.bf16.gmra.mxu0 %v1295
    %v1666 = vpop.f32.mrf.mxu0
    %v1667 = vadd.f32 %v1654, %v1666
    %v1668 = vpop.f32.mrf.mxu0
    %1669 = vdwg.mxu0
    %1670 = vmatpush.bf16.msra.mxu0 %v1520
    %1671 = vmatpush.bf16.msra.mxu0 %v1516
    %1672 = vmatpush.bf16.msra.mxu0 %v1512
    %1673 = vmatpush.bf16.msra.mxu0 %v1508
    %1674 = vmatpush.bf16.msra.mxu0 %v1504
    %1675 = vmatpush.bf16.msra.mxu0 %v1500
    %1676 = vmatpush.bf16.msra.mxu0 %v1496
    %1677 = vmatpush.bf16.msra.mxu0 %v1492
    %1678 = vmatmul.bf16.gmra.mxu0 %v1294
    %v1679 = vpop.f32.mrf.mxu0
    %v1680 = vadd.f32 %v1285, %v1679
    %v1681 = vpop.f32.mrf.mxu0
    %1682 = vdwg.mxu0
    %1683 = vmatpush.bf16.msra.mxu0 %v1552
    %1684 = vmatpush.bf16.msra.mxu0 %v1548
    %1685 = vmatpush.bf16.msra.mxu0 %v1544
    %1686 = vmatpush.bf16.msra.mxu0 %v1540
    %1687 = vmatpush.bf16.msra.mxu0 %v1536
    %1688 = vmatpush.bf16.msra.mxu0 %v1532
    %1689 = vmatpush.bf16.msra.mxu0 %v1528
    %1690 = vmatpush.bf16.msra.mxu0 %v1524
    %1691 = vmatmul.bf16.gmra.mxu0 %v1295
    %v1692 = vpop.f32.mrf.mxu0
    %v1693 = vadd.f32 %v1680, %v1692
    %v1694 = vpop.f32.mrf.mxu0
    %1695 = vdwg.mxu0
    %1696 = vmatpush.bf16.msra.mxu0 %v1521
    %1697 = vmatpush.bf16.msra.mxu0 %v1517
    %1698 = vmatpush.bf16.msra.mxu0 %v1513
    %1699 = vmatpush.bf16.msra.mxu0 %v1509
    %1700 = vmatpush.bf16.msra.mxu0 %v1505
    %1701 = vmatpush.bf16.msra.mxu0 %v1501
    %1702 = vmatpush.bf16.msra.mxu0 %v1497
    %1703 = vmatpush.bf16.msra.mxu0 %v1493
    %1704 = vmatmul.bf16.gmra.mxu0 %v1294
    %v1705 = vpop.f32.mrf.mxu0
    %v1706 = vadd.f32 %v1286, %v1705
    %v1707 = vpop.f32.mrf.mxu0
    %1708 = vdwg.mxu0
    %1709 = vmatpush.bf16.msra.mxu0 %v1553
    %1710 = vmatpush.bf16.msra.mxu0 %v1549
    %1711 = vmatpush.bf16.msra.mxu0 %v1545
    %1712 = vmatpush.bf16.msra.mxu0 %v1541
    %1713 = vmatpush.bf16.msra.mxu0 %v1537
    %1714 = vmatpush.bf16.msra.mxu0 %v1533
    %1715 = vmatpush.bf16.msra.mxu0 %v1529
    %1716 = vmatpush.bf16.msra.mxu0 %v1525
    %1717 = vmatmul.bf16.gmra.mxu0 %v1295
    %v1718 = vpop.f32.mrf.mxu0
    %v1719 = vadd.f32 %v1706, %v1718
    %v1720 = vpop.f32.mrf.mxu0
    %1721 = vdwg.mxu0
    %v1722 = vxor.u32 %v1641, 2147483648
    %v1723 = vmul.f32 %v1722, 1.442695
    %v1724 = vpow.pop %v1723
    %v1725 = vadd.f32 %v1724, 1.0
    %v1726 = vrcp.pop %v1725
    %v1727 = vmul.f32 %v1725, %v1726
    %v1728 = vsub.f32 1.0, %v1727
    %v1729 = vmul.f32 %v1726, %v1728
    %v1730 = vadd.f32 %v1726, %v1729
    %vm1731 = vweird.f32 %v1725
    %vm1732 = vweird.f32 %v1726
    %vm1733 = vmor %vm1731, %vm1732
    %v1734 = vsel %vm1733, %v1726, %v1730
    %v1735 = vand.u32 2147483647, %v1725
    %vm1736 = vcmp.eq.f32.partialorder %v1735, 8.507059e+37
    %v1737 = vand.u32 %v1725, 2147483648
    %v1738 = vor.u32 1.1754944e-38, %v1737
    %v1739 = vsel %vm1736, %v1738, %v1734
    %v1740 = vmul.f32 1.0, %v1739
    %v1741 = vxor.u32 %v1667, 2147483648
    %v1742 = vmul.f32 %v1741, 1.442695
    %v1743 = vpow.pop %v1742
    %v1744 = vadd.f32 %v1743, 1.0
    %v1745 = vrcp.pop %v1744
    %v1746 = vmul.f32 %v1744, %v1745
    %v1747 = vsub.f32 1.0, %v1746
    %v1748 = vmul.f32 %v1745, %v1747
    %v1749 = vadd.f32 %v1745, %v1748
    %vm1750 = vweird.f32 %v1744
    %vm1751 = vweird.f32 %v1745
    %vm1752 = vmor %vm1750, %vm1751
    %v1753 = vsel %vm1752, %v1745, %v1749
    %v1754 = vand.u32 2147483647, %v1744
    %vm1755 = vcmp.eq.f32.partialorder %v1754, 8.507059e+37
    %v1756 = vand.u32 %v1744, 2147483648
    %v1757 = vor.u32 1.1754944e-38, %v1756
    %v1758 = vsel %vm1755, %v1757, %v1753
    %v1759 = vmul.f32 1.0, %v1758
    %v1760 = vtanh.pop %v1693
    %v1761 = vxor.u32 %v1719, 2147483648
    %v1762 = vmul.f32 %v1761, 1.442695
    %v1763 = vpow.pop %v1762
    %v1764 = vadd.f32 %v1763, 1.0
    %v1765 = vrcp.pop %v1764
    %v1766 = vmul.f32 %v1764, %v1765
    %v1767 = vsub.f32 1.0, %v1766
    %v1768 = vmul.f32 %v1765, %v1767
    %v1769 = vadd.f32 %v1765, %v1768
    %vm1770 = vweird.f32 %v1764
    %vm1771 = vweird.f32 %v1765
    %vm1772 = vmor %vm1770, %vm1771
    %v1773 = vsel %vm1772, %v1765, %v1769
    %v1774 = vand.u32 2147483647, %v1764
    %vm1775 = vcmp.eq.f32.partialorder %v1774, 8.507059e+37
    %v1776 = vand.u32 %v1764, 2147483648
    %v1777 = vor.u32 1.1754944e-38, %v1776
    %v1778 = vsel %vm1775, %v1777, %v1773
    %v1779 = vmul.f32 1.0, %v1778
    %s1780 = scalar_lea.vmem %s2, 16
    %v1781 = vld [vmem:[%s1780] sm:$0xff]
    %v1782 = vmul.f32 %v1759, %v1781
    %v1783 = vmul.f32 %v1740, %v1760
    %v1784 = vadd.f32 %v1782, %v1783
    %v1785 = vtanh.pop %v1784
    %v1786 = vmul.f32 %v1779, %v1785
    %s1787 = scalar_lea.vmem [#allocation7], 16
    %1788 = vst [vmem:[%s1787] sm:$0xff] %v1786
    %s1789 = scalar_lea.vmem [#allocation9], 16
    %1790 = vst [vmem:[%s1789] sm:$0xff] %v1784
    %v1791 = vpack.c.bf16 %v1786, %v1786
    %v1792 = vld [vmem:[%s5] sm:$0xf]
    %v1793 = vld [vmem:[%s5 + $0x4] sm:$0xf]
    %v1794 = vld [vmem:[%s5 + $0x8] sm:$0xf]
    %v1795 = vld [vmem:[%s5 + $0xc] sm:$0xf]
    %v1796 = vld [vmem:[%s5 + $0x10] sm:$0xf]
    %v1797 = vld [vmem:[%s5 + $0x14] sm:$0xf]
    %v1798 = vld [vmem:[%s5 + $0x18] sm:$0xf]
    %v1799 = vld [vmem:[%s5 + $0x1c] sm:$0xf]
    %v1800 = vld [vmem:[%s5 + $0x20] sm:$0xf]
    %v1801 = vld [vmem:[%s5 + $0x24] sm:$0xf]
    %v1802 = vld [vmem:[%s5 + $0x28] sm:$0xf]
    %v1803 = vld [vmem:[%s5 + $0x2c] sm:$0xf]
    %v1804 = vld [vmem:[%s5 + $0x30] sm:$0xf]
    %v1805 = vld [vmem:[%s5 + $0x34] sm:$0xf]
    %v1806 = vld [vmem:[%s5 + $0x38] sm:$0xf]
    %v1807 = vld [vmem:[%s5 + $0x3c] sm:$0xf]
    %v1808 = vld [vmem:[%s6] sm:$0x1]
    %v1810 = vperm.slane %v1808, 0
    %v1828 = vunpack.c.l.b16 %v1792
    %v1829 = vunpack.c.l.b16 %v1793
    %v1830 = vunpack.c.l.b16 %v1794
    %v1831 = vunpack.c.l.b16 %v1795
    %v1832 = vunpack.c.l.b16 %v1796
    %v1833 = vunpack.c.l.b16 %v1797
    %v1834 = vunpack.c.l.b16 %v1798
    %v1835 = vunpack.c.l.b16 %v1799
    %v1836 = vunpack.c.l.b16 %v1800
    %v1837 = vunpack.c.l.b16 %v1801
    %v1838 = vunpack.c.l.b16 %v1802
    %v1839 = vunpack.c.l.b16 %v1803
    %v1840 = vunpack.c.l.b16 %v1804
    %v1841 = vunpack.c.l.b16 %v1805
    %v1842 = vunpack.c.l.b16 %v1806
    %v1843 = vunpack.c.l.b16 %v1807
    %v1844 = vpack.c.b16 %v1829, %v1828
    %v1845 = vpack.c.b16 %v1831, %v1830
    %v1846 = vpack.c.b16 %v1833, %v1832
    %v1847 = vpack.c.b16 %v1835, %v1834
    %v1848 = vpack.c.b16 %v1837, %v1836
    %v1849 = vpack.c.b16 %v1839, %v1838
    %v1850 = vpack.c.b16 %v1841, %v1840
    %v1851 = vpack.c.b16 %v1843, %v1842
    %1860 = vmatpush.bf16.msra.mxu0 %v1851
    %1861 = vmatpush.bf16.msra.mxu0 %v1850
    %1862 = vmatpush.bf16.msra.mxu0 %v1849
    %1863 = vmatpush.bf16.msra.mxu0 %v1848
    %1864 = vmatpush.bf16.msra.mxu0 %v1847
    %1865 = vmatpush.bf16.msra.mxu0 %v1846
    %1866 = vmatpush.bf16.msra.mxu0 %v1845
    %1867 = vmatpush.bf16.msra.mxu0 %v1844
    %1868 = vmatmul.bf16.gmra.mxu0 %v1791
    %v1869 = vpop.f32.mrf.mxu0
    %v1870 = vadd.f32 %v1810, %v1869
    %v1871 = vpop.f32.mrf.mxu0
    %1872 = vdwg.mxu0
    %vm1873 = vcmask 64512
    %1874 = vst.msk [vmem:[#allocation6] sm:$0xff] %vm1873, %v1870
    // Predicated region
    $region34: #{lstm_decoder_forward.1} parent=1 // pred_check
      _
    $region35: #{lstm_decoder_forward.1} parent=1 // pred_check_branch
      %1876 = sbr.rel (0) target = $region37
    $region36: #{lstm_decoder_forward.1} parent=1 // pred_region
      %1878 = vsyncadd [#allocation5], 0
      %s1880 = sshll.u32 [#allocation6], 4
      %s1881 = int_to_ptr.vmem [resolvable:$true] %s1880
      %s1882 = sshll.u32 %s7, 4
      %s1883 = int_to_ptr.hbm [resolvable:$true] %s1882
      %1885 = dma.vmem_to_hbm [thread:$0]  %s1881, 128, %s1883, [#allocation5]
    $region37: #{lstm_decoder_forward.1} parent=1 // pred_fallthru
      _
    // Predicated region
    $region38: #{lstm_decoder_forward.1} parent=1 // pred_check
      _
    $region39: #{lstm_decoder_forward.1} parent=1 // pred_check_branch
      %1887 = sbr.rel (0) target = $region41
    $region40: #{lstm_decoder_forward.1} parent=1 // pred_region
      %1889 = vsyncadd [#allocation8], 0
      %s1890 = sshll.u32 [#allocation7], 4
      %s1891 = int_to_ptr.vmem [resolvable:$true] %s1890
      %s1892 = sshll.u32 %s8, 4
      %s1893 = int_to_ptr.hbm [resolvable:$true] %s1892
      %1898 = dma.vmem_to_hbm [thread:$0]  %s1891, 384, %s1893, [#allocation8], 128, 128, 8
    $region41: #{lstm_decoder_forward.1} parent=1 // pred_fallthru
      _
    // Predicated region
    $region42: #{lstm_decoder_forward.1} parent=1 // pred_check
      _
    $region43: #{lstm_decoder_forward.1} parent=1 // pred_check_branch
      %1900 = sbr.rel (0) target = $region45
    $region44: #{lstm_decoder_forward.1} parent=1 // pred_region
      %1902 = vsyncadd [#allocation8], 0
      %s1903 = sshll.u32 [#allocation9], 4
      %s1904 = int_to_ptr.vmem [resolvable:$true] %s1903
      %s1905 = sshll.u32 %s9, 4
      %s1906 = int_to_ptr.hbm [resolvable:$true] %s1905
      %1911 = dma.vmem_to_hbm [thread:$0]  %s1904, 384, %s1906, [#allocation8], 128, 128, 8
    $region45: #{lstm_decoder_forward.1} parent=1 // pred_fallthru
      _
    // Predicated region
    $region46: #{lstm_decoder_forward.1} parent=1 // pred_check
      _
    $region47: #{lstm_decoder_forward.1} parent=1 // pred_check_branch
      %1913 = sbr.rel (0) target = $region49
    $region48: #{lstm_decoder_forward.1} parent=1 // pred_region
      %1915 = dma.done [#allocation5], 128
    $region49: #{lstm_decoder_forward.1} parent=1 // pred_fallthru
      _
    // Predicated region
    $region50: #{lstm_decoder_forward.1} parent=1 // pred_check
      _
    $region51: #{lstm_decoder_forward.1} parent=1 // pred_check_branch
      %1917 = sbr.rel (0) target = $region53
    $region52: #{lstm_decoder_forward.1} parent=1 // pred_region
      %1919 = dma.done [#allocation8], 384
    $region53: #{lstm_decoder_forward.1} parent=1 // pred_fallthru
      _
    // Predicated region
    $region54: #{lstm_decoder_forward.1} parent=1 // pred_check
      _
    $region55: #{lstm_decoder_forward.1} parent=1 // pred_check_branch
      %1921 = sbr.rel (0) target = $region57
    $region56: #{lstm_decoder_forward.1} parent=1 // pred_region
      %1923 = dma.done [#allocation8], 384
    $region57: #{lstm_decoder_forward.1} parent=1 // pred_fallthru
      _
    %1924 = vsyncpa [#allocation4], 1
    %1925 = vsyncpa [#allocation5], 1
    %1926 = vsyncpa [#allocation8], 1

</llo_original>
